<compile_context>
chip_gen: v7x
topology: tpu7x:2x2x1
jax: 0.10.0
libtpu: 0.0.40
codegen_flags: <defaults>
</compile_context>

<pallas_src>
import functools

import jax
import jax.numpy as jnp
from jax.experimental import pallas as pl
from jax.experimental.pallas import tpu as pltpu

EPS = 1e-5                      # nn.BatchNorm2d default eps
COMPUTE_DTYPE = jnp.bfloat16    # MXU operand dtype (accumulation stays f32)


# ----------------------------------------------------------------------------
# Pallas kernel: per-image  BN-affine -> (ReLU) -> conv (-> +residual)
# ----------------------------------------------------------------------------
def _make_affine_conv_kernel(*, num_kh, num_kw, ho, wo, relu, masked,
                             add_residual, out_dtype):
    """Build the fused per-image kernel.

    y = mask * relu(x * scale + shift)   (f32 elementwise, then cast to bf16)
    out = conv(y) expressed as `num_kh` MXU matmuls over a width-concatenated
    (Hx, Wo, num_kw*Cx) LHS, f32 accumulator, optional residual add.
    """

    def kernel(*refs):
        x_ref, scale_ref, shift_ref, w_ref = refs[0], refs[1], refs[2], refs[3]
        i = 4
        if masked:
            rmask_ref, cmask_ref = refs[i], refs[i + 1]
            i += 2
        if add_residual:
            res_ref = refs[i]
            i += 1
        o_ref = refs[i]

        # BN affine + ReLU in f32 on the VPU (v5e has no bf16 VALU).
        y = x_ref[0].astype(jnp.float32) * scale_ref[...] + shift_ref[...]
        if relu:
            y = jnp.maximum(y, 0.0)
        if masked:
            # Re-zero the spatial zero-padding (the BN shift made it non-zero).
            y = y * rmask_ref[...] * cmask_ref[...]
        y = y.astype(COMPUTE_DTYPE)                       # bf16 into the MXU

        cx = y.shape[-1]
        cout = w_ref.shape[-1]
        if num_kw > 1:
            # One channel-concat of the width-shifted views -> fat K per matmul.
            yw = jnp.concatenate(
                [y[:, kw:kw + wo, :] for kw in range(num_kw)], axis=-1)
        else:
            yw = y                                        # (Hx, Wo, num_kw*Cx)

        acc = jnp.zeros((ho * wo, cout), jnp.float32)
        for kh in range(num_kh):
            lhs = yw[kh:kh + ho].reshape(ho * wo, num_kw * cx)
            acc = acc + jnp.dot(lhs, w_ref[kh],
                                preferred_element_type=jnp.float32)
        out = acc.reshape(ho, wo, cout)
        if add_residual:
            out = out + res_ref[0].astype(jnp.float32)
        o_ref[0] = out.astype(out_dtype)

    return kernel


def _bn_scale_shift(x, gamma, beta):
    """Training-mode BatchNorm2d stats folded to per-channel scale/shift (f32).

    Centered two-pass variance (matches nn.BatchNorm2d numerics better than
    E[x^2]-E[x]^2)."""
    xf = x.astype(jnp.float32)
    mean = jnp.mean(xf, axis=(0, 1, 2))
    var = jnp.mean(jnp.square(xf - mean), axis=(0, 1, 2))   # biased variance
    scale = gamma.astype(jnp.float32) * jax.lax.rsqrt(var + EPS)
    shift = beta.astype(jnp.float32) - mean * scale
    return scale, shift


def bn_conv(x, gamma, beta, w, *, ksize, relu, stride=1, residual=None):
    """Fused BN(batch stats) -> (ReLU) -> Conv2d (pad=1 for 3x3, 0 for 1x1).

    x: (N, H, W, Cin) NHWC.  w: HWIO (ksize, ksize, Cin, Cout).
    Returns (N, Ho, Wo, Cout) NHWC in x.dtype (residual fused if given).
    """
    n, h, wd, cin = x.shape
    cout = w.shape[-1]
    scale, shift = _bn_scale_shift(x, gamma, beta)

    masks = None
    if ksize == 1:
        # Strided 1x1 conv == subsample first (affine is pointwise), then 1x1.
        x_in = x if stride == 1 else x[:, ::stride, ::stride, :]
        ho, wo = x_in.shape[1], x_in.shape[2]
        num_kh = num_kw = 1
        cx = cin
        w_packed = w.reshape(1, cin, cout)
    elif stride == 1:
        # 3x3 "same" conv: zero-pad in glue, 3 width-concatenated matmuls.
        ho, wo = h, wd
        num_kh = num_kw = 3
        cx = cin
        x_in = jnp.pad(x, ((0, 0), (1, 1), (1, 1), (0, 0)))
        w_packed = w.reshape(3, 3 * cin, cout)        # kw-major, then Cin
        ri = jnp.arange(h + 2)
        ci = jnp.arange(wd + 2)
        row_ok = ((ri >= 1) & (ri <= h)).astype(jnp.float32)
        col_ok = ((ci >= 1) & (ci <= wd)).astype(jnp.float32)
        masks = (jnp.broadcast_to(row_ok[:, None, None], (h + 2, 1, cx)),
                 jnp.broadcast_to(col_ok[None, :, None], (1, wd + 2, cx)))
    else:
        # 3x3 stride-2 conv with the stride folded in: pack 2x2 super-pixels
        # into channels (wrapper reshape/transpose); kernel = 2x2 VALID conv.
        assert ksize == 3 and stride == 2 and h % 2 == 0 and wd % 2 == 0, (
            "3x3 conv supports stride 1, or stride 2 with even H and W")
        ho, wo = h // 2, wd // 2
        num_kh = num_kw = 2
        cx = 4 * cin
        xp = jnp.pad(x, ((0, 0), (1, 1), (1, 1), (0, 0)))
        x_in = (xp.reshape(n, ho + 1, 2, wo + 1, 2, cin)
                  .transpose(0, 1, 3, 2, 4, 5)
                  .reshape(n, ho + 1, wo + 1, cx))
        # Super-kernel weights: channel block (p, q) of super-tap (sh, sw)
        # carries original tap (2*sh+p, 2*sw+q) when inside the 3x3 window.
        w_sup = jnp.zeros((2, 2, 2, 2, cin, cout), w.dtype)
        for sh in range(2):
            for sw in range(2):
                for p in range(2):
                    for q in range(2):
                        kh, kw = 2 * sh + p, 2 * sw + q
                        if kh <= 2 and kw <= 2:
                            w_sup = w_sup.at[sh, sw, p, q].set(w[kh, kw])
        w_packed = w_sup.reshape(2, 2 * cx, cout)
        # Zero-padding locations in packed coordinates (channel-block aware).
        a = jnp.arange(ho + 1)[:, None, None]
        b = jnp.arange(wo + 1)[None, :, None]
        blk = jnp.arange(cx)[None, None, :] // cin
        p_par, q_par = blk // 2, blk % 2
        row_bad = ((a == 0) & (p_par == 0)) | ((a == ho) & (p_par == 1))
        col_bad = ((b == 0) & (q_par == 0)) | ((b == wo) & (q_par == 1))
        masks = ((~row_bad).astype(jnp.float32),          # (ho+1, 1, cx)
                 (~col_bad).astype(jnp.float32))          # (1, wo+1, cx)
        scale = jnp.tile(scale, 4)
        shift = jnp.tile(shift, 4)

    hx, wx = x_in.shape[1], x_in.shape[2]

    args = [x_in,
            scale.reshape(1, 1, cx),
            shift.reshape(1, 1, cx),
            w_packed.astype(COMPUTE_DTYPE)]
    in_specs = [
        pl.BlockSpec((1, hx, wx, cx), lambda i: (i, 0, 0, 0)),
        pl.BlockSpec((1, 1, cx), lambda i: (0, 0, 0)),
        pl.BlockSpec((1, 1, cx), lambda i: (0, 0, 0)),
        pl.BlockSpec((num_kh, num_kw * cx, cout), lambda i: (0, 0, 0)),
    ]
    if masks is not None:
        args += [masks[0], masks[1]]
        in_specs += [pl.BlockSpec(masks[0].shape, lambda i: (0, 0, 0)),
                     pl.BlockSpec(masks[1].shape, lambda i: (0, 0, 0))]
    if residual is not None:
        assert residual.shape == (n, ho, wo, cout)
        args.append(residual)
        in_specs.append(pl.BlockSpec((1, ho, wo, cout), lambda i: (i, 0, 0, 0)))

    kernel = _make_affine_conv_kernel(
        num_kh=num_kh, num_kw=num_kw, ho=ho, wo=wo, relu=relu,
        masked=masks is not None, add_residual=residual is not None,
        out_dtype=x.dtype)

    out_bytes = n * ho * wo * cout * jnp.dtype(x.dtype).itemsize
    cost = pl.CostEstimate(
        flops=2 * n * ho * wo * num_kh * (num_kw * cx) * cout,
        transcendentals=0,
        bytes_accessed=int(sum(int(a.size) * a.dtype.itemsize for a in args)
                           + out_bytes))

    return pl.pallas_call(
        kernel,
        out_shape=jax.ShapeDtypeStruct((n, ho, wo, cout), x.dtype),
        grid=(n,),
        in_specs=in_specs,
        out_specs=pl.BlockSpec((1, ho, wo, cout), lambda i: (i, 0, 0, 0)),
        compiler_params=pltpu.CompilerParams(
            dimension_semantics=("parallel",),
            vmem_limit_bytes=32 * 1024 * 1024),
        cost_estimate=cost,
    )(*args)


# ----------------------------------------------------------------------------
# _PreActUnit forward
# ----------------------------------------------------------------------------
def preact_unit_forward(params, x_nchw, *, expansion, stride):
    """Forward of _PreActUnit.  x_nchw: (N, Cin, H, W).  Returns NCHW."""
    x = jnp.transpose(x_nchw, (0, 2, 3, 1))  # NCHW -> NHWC

    if "ws" in params:  # i_block: BN (no ReLU) -> 1x1 conv with stride
        shortcut = bn_conv(x, params["gs"], params["bs"], params["ws"],
                           ksize=1, relu=False, stride=stride)
    else:
        shortcut = x

    # TODO(synk): nn.Dropout with drop_rate > 0 (training RNG mask) not
    # implemented; the module default drop_rate=0.0 is the identity.
    if expansion == 1:
        h = bn_conv(x, params["g1"], params["b1"], params["w1"],
                    ksize=3, relu=True, stride=stride)
        out = bn_conv(h, params["g2"], params["b2"], params["w2"],
                      ksize=3, relu=True, stride=1, residual=shortcut)
    else:
        h = bn_conv(x, params["g1"], params["b1"], params["w1"],
                    ksize=1, relu=True, stride=1)
        h = bn_conv(h, params["g2"], params["b2"], params["w2"],
                    ksize=3, relu=True, stride=stride)
        out = bn_conv(h, params["g3"], params["b3"], params["w3"],
                      ksize=1, relu=True, stride=1, residual=shortcut)

    return jnp.transpose(out, (0, 3, 1, 2))  # NHWC -> NCHW


def init_params(key, cin, cout, expansion, stride):
    """Deterministic synthetic parameters (PyTorch OIHW weights -> HWIO)."""
    def conv_w(k, ci, co, ks):
        w = jax.random.normal(k, (co, ci, ks, ks), jnp.float32)
        w = w * (1.0 / (ci * ks * ks)) ** 0.5
        return jnp.transpose(w, (2, 3, 1, 0))  # OIHW -> HWIO

    def bn(kg, kb, c):
        g = jax.random.uniform(kg, (c,), jnp.float32, 0.5, 1.5)
        b = jax.random.normal(kb, (c,), jnp.float32) * 0.1
        return g, b

    keys = iter(jax.random.split(key, 16))
    p = {}
    if expansion == 1:
        p["g1"], p["b1"] = bn(next(keys), next(keys), cin)
        p["w1"] = conv_w(next(keys), cin, cout, 3)
        p["g2"], p["b2"] = bn(next(keys), next(keys), cout)
        p["w2"] = conv_w(next(keys), cout, cout, 3)
    else:
        p["g1"], p["b1"] = bn(next(keys), next(keys), cin)
        p["w1"] = conv_w(next(keys), cin, cout, 1)
        p["g2"], p["b2"] = bn(next(keys), next(keys), cout)
        p["w2"] = conv_w(next(keys), cout, cout, 3)
        p["g3"], p["b3"] = bn(next(keys), next(keys), cout)
        p["w3"] = conv_w(next(keys), cout, expansion * cout, 1)
    if stride != 1 or cin != expansion * cout:
        p["gs"], p["bs"] = bn(next(keys), next(keys), cin)
        p["ws"] = conv_w(next(keys), cin, expansion * cout, 1)
    return p


# ----------------------------------------------------------------------------
# Pure-JAX reference (XLA convs).  Conv operands are cast to the same bf16
# compute dtype as the kernel's MXU path, with f32 accumulation, so the check
# isolates the kernel's conv / stride / residual / BN logic.
# ----------------------------------------------------------------------------
def _ref_bn(x, g, b):
    mean = jnp.mean(x, axis=(0, 1, 2), keepdims=True)
    var = jnp.mean((x - mean) ** 2, axis=(0, 1, 2), keepdims=True)
    return ((x - mean) * jax.lax.rsqrt(var + EPS)
            * g.reshape(1, 1, 1, -1) + b.reshape(1, 1, 1, -1))


def _ref_conv(x, w, stride, pad):
    return jax.lax.conv_general_dilated(
        x.astype(COMPUTE_DTYPE), w.astype(COMPUTE_DTYPE),
        (stride, stride), [(pad, pad), (pad, pad)],
        dimension_numbers=("NHWC", "HWIO", "NHWC"),
        preferred_element_type=jnp.float32).astype(x.dtype)


def ref_forward(params, x_nchw, *, expansion, stride):
    x = jnp.transpose(x_nchw, (0, 2, 3, 1))
    if "ws" in params:
        sc = _ref_conv(_ref_bn(x, params["gs"], params["bs"]),
                       params["ws"], stride, 0)
    else:
        sc = x
    if expansion == 1:
        h = _ref_conv(jnp.maximum(_ref_bn(x, params["g1"], params["b1"]), 0.0),
                      params["w1"], stride, 1)
        h = _ref_conv(jnp.maximum(_ref_bn(h, params["g2"], params["b2"]), 0.0),
                      params["w2"], 1, 1)
    else:
        h = _ref_conv(jnp.maximum(_ref_bn(x, params["g1"], params["b1"]), 0.0),
                      params["w1"], 1, 0)
        h = _ref_conv(jnp.maximum(_ref_bn(h, params["g2"], params["b2"]), 0.0),
                      params["w2"], stride, 1)
        h = _ref_conv(jnp.maximum(_ref_bn(h, params["g3"], params["b3"]), 0.0),
                      params["w3"], 1, 0)
    return jnp.transpose(h + sc, (0, 3, 1, 2))


if __name__ == "__main__":
    key = jax.random.PRNGKey(0)
    kx, kp1, kp2 = jax.random.split(key, 3)

    # Case 1: basic block (expansion=1), stride=2 -> i_block (downsample) path.
    N, Cin, H, W = 2, 4, 16, 16
    Cout, expansion, stride = 8, 1, 2
    x = jax.random.normal(kx, (N, Cin, H, W), jnp.float32)
    params = init_params(kp1, Cin, Cout, expansion, stride)

    fwd1 = jax.jit(functools.partial(preact_unit_forward,
                                     expansion=expansion, stride=stride))
    out = jax.block_until_ready(fwd1(params, x))
    ref = ref_forward(params, x, expansion=expansion, stride=stride)
    assert out.shape == (N, expansion * Cout, H // stride, W // stride), out.shape
    assert jnp.allclose(out, ref, atol=2e-2, rtol=2e-2), "mismatch (basic block)"

    # Case 2: bottleneck branch (expansion=2), stride=1 -> i_block from channel
    # mismatch.
    params2 = init_params(kp2, Cin, Cout, 2, 1)
    fwd2 = jax.jit(functools.partial(preact_unit_forward, expansion=2, stride=1))
    out2 = jax.block_until_ready(fwd2(params2, x))
    ref2 = ref_forward(params2, x, expansion=2, stride=1)
    assert out2.shape == (N, 2 * Cout, H, W), out2.shape
    assert jnp.allclose(out2, ref2, atol=2e-2, rtol=2e-2), "mismatch (bottleneck)"

    print("KERNEL_OK")
</pallas_src>

<mosaic_0001>
module attributes {stable_mosaic.version = 11 : i64} {
  func.func @kernel(%arg0: i32, %arg1: memref<1x9x9x16xf32, #tpu.memory_space<vmem>>, %arg2: memref<1x1x16xf32, #tpu.memory_space<vmem>>, %arg3: memref<1x1x16xf32, #tpu.memory_space<vmem>>, %arg4: memref<2x32x8xbf16, #tpu.memory_space<vmem>>, %arg5: memref<9x1x16xf32, #tpu.memory_space<vmem>>, %arg6: memref<1x9x16xf32, #tpu.memory_space<vmem>>, %arg7: memref<1x8x8x8xf32, #tpu.memory_space<vmem>>) attributes {dimension_semantics = [#tpu.dimension_semantics<parallel>], iteration_bounds = array<i64: 2>, scalar_prefetch = 0 : i64, scratch_operands = 0 : i64, tpu.core_type = #tpu.core_type<tc>, window_params = [{transform_indices = @transform_0, window_bounds = array<i64: 1, 9, 9, 16>}, {pipeline_mode = #tpu.pipeline_mode<synchronous>, transform_indices = @transform_1, window_bounds = array<i64: 1, 1, 16>}, {pipeline_mode = #tpu.pipeline_mode<synchronous>, transform_indices = @transform_2, window_bounds = array<i64: 1, 1, 16>}, {pipeline_mode = #tpu.pipeline_mode<synchronous>, transform_indices = @transform_3, window_bounds = array<i64: 2, 32, 8>}, {pipeline_mode = #tpu.pipeline_mode<synchronous>, transform_indices = @transform_4, window_bounds = array<i64: 9, 1, 16>}, {pipeline_mode = #tpu.pipeline_mode<synchronous>, transform_indices = @transform_5, window_bounds = array<i64: 1, 9, 16>}, {transform_indices = @transform_6, window_bounds = array<i64: 1, 8, 8, 8>}]} {
    %c0 = arith.constant 0 : index
    %c0_0 = arith.constant 0 : index
    %c0_1 = arith.constant 0 : index
    %c0_2 = arith.constant 0 : index
    %0 = vector.load %arg1[%c0, %c0_0, %c0_1, %c0_2] : memref<1x9x9x16xf32, #tpu.memory_space<vmem>>, vector<1x9x9x16xf32>
    %1 = vector.shape_cast %0 : vector<1x9x9x16xf32> to vector<9x9x16xf32>
    %c0_3 = arith.constant 0 : index
    %c0_4 = arith.constant 0 : index
    %c0_5 = arith.constant 0 : index
    %2 = vector.load %arg2[%c0_3, %c0_4, %c0_5] : memref<1x1x16xf32, #tpu.memory_space<vmem>>, vector<1x1x16xf32>
    %3 = vector.broadcast %2 : vector<1x1x16xf32> to vector<9x9x16xf32>
    %4 = arith.mulf %1, %3 : vector<9x9x16xf32>
    %c0_6 = arith.constant 0 : index
    %c0_7 = arith.constant 0 : index
    %c0_8 = arith.constant 0 : index
    %5 = vector.load %arg3[%c0_6, %c0_7, %c0_8] : memref<1x1x16xf32, #tpu.memory_space<vmem>>, vector<1x1x16xf32>
    %6 = vector.broadcast %5 : vector<1x1x16xf32> to vector<9x9x16xf32>
    %7 = arith.addf %4, %6 : vector<9x9x16xf32>
    %cst = arith.constant 0.000000e+00 : f32
    %8 = vector.broadcast %cst : f32 to vector<9x9x16xf32>
    %9 = arith.maximumf %7, %8 : vector<9x9x16xf32>
    %c0_9 = arith.constant 0 : index
    %c0_10 = arith.constant 0 : index
    %c0_11 = arith.constant 0 : index
    %10 = vector.load %arg5[%c0_9, %c0_10, %c0_11] : memref<9x1x16xf32, #tpu.memory_space<vmem>>, vector<9x1x16xf32>
    %11 = vector.broadcast %10 : vector<9x1x16xf32> to vector<9x9x16xf32>
    %12 = arith.mulf %9, %11 : vector<9x9x16xf32>
    %c0_12 = arith.constant 0 : index
    %c0_13 = arith.constant 0 : index
    %c0_14 = arith.constant 0 : index
    %13 = vector.load %arg6[%c0_12, %c0_13, %c0_14] : memref<1x9x16xf32, #tpu.memory_space<vmem>>, vector<1x9x16xf32>
    %14 = vector.broadcast %13 : vector<1x9x16xf32> to vector<9x9x16xf32>
    %15 = arith.mulf %12, %14 : vector<9x9x16xf32>
    %16 = arith.truncf %15 : vector<9x9x16xf32> to vector<9x9x16xbf16>
    %17 = vector.extract_strided_slice %16 {offsets = [0, 0, 0], sizes = [9, 8, 16], strides = [1, 1, 1]} : vector<9x9x16xbf16> to vector<9x8x16xbf16>
    %18 = vector.extract_strided_slice %16 {offsets = [0, 1, 0], sizes = [9, 8, 16], strides = [1, 1, 1]} : vector<9x9x16xbf16> to vector<9x8x16xbf16>
    %19 = tpu.concatenate %17, %18 in 2 : vector<9x8x16xbf16>, vector<9x8x16xbf16> -> vector<9x8x32xbf16>
    %cst_15 = arith.constant 0.000000e+00 : f32
    %20 = vector.broadcast %cst_15 : f32 to vector<64x8xf32>
    %21 = vector.extract_strided_slice %19 {offsets = [0, 0, 0], sizes = [8, 8, 32], strides = [1, 1, 1]} : vector<9x8x32xbf16> to vector<8x8x32xbf16>
    %22 = vector.shape_cast %21 : vector<8x8x32xbf16> to vector<64x32xbf16>
    %c0_16 = arith.constant 0 : index
    %c0_17 = arith.constant 0 : index
    %c0_18 = arith.constant 0 : index
    %23 = vector.load %arg4[%c0_16, %c0_17, %c0_18] : memref<2x32x8xbf16, #tpu.memory_space<vmem>>, vector<1x32x8xbf16>
    %24 = vector.shape_cast %23 : vector<1x32x8xbf16> to vector<32x8xbf16>
    %cst_19 = arith.constant dense<0.000000e+00> : vector<64x8xf32>
    %25 = tpu.matmul %22, %24, %cst_19 {dimension_numbers = #tpu.dot_dimension_numbers<[1], [0], [0], [1], [0, 0, 1, 1], [], []>} : vector<64x32xbf16>, vector<32x8xbf16>, vector<64x8xf32> -> vector<64x8xf32>
    %26 = arith.addf %20, %25 : vector<64x8xf32>
    %27 = vector.extract_strided_slice %19 {offsets = [1, 0, 0], sizes = [8, 8, 32], strides = [1, 1, 1]} : vector<9x8x32xbf16> to vector<8x8x32xbf16>
    %28 = vector.shape_cast %27 : vector<8x8x32xbf16> to vector<64x32xbf16>
    %c1 = arith.constant 1 : index
    %c0_20 = arith.constant 0 : index
    %c0_21 = arith.constant 0 : index
    %29 = vector.load %arg4[%c1, %c0_20, %c0_21] : memref<2x32x8xbf16, #tpu.memory_space<vmem>>, vector<1x32x8xbf16>
    %30 = vector.shape_cast %29 : vector<1x32x8xbf16> to vector<32x8xbf16>
    %cst_22 = arith.constant dense<0.000000e+00> : vector<64x8xf32>
    %31 = tpu.matmul %28, %30, %cst_22 {dimension_numbers = #tpu.dot_dimension_numbers<[1], [0], [0], [1], [0, 0, 1, 1], [], []>} : vector<64x32xbf16>, vector<32x8xbf16>, vector<64x8xf32> -> vector<64x8xf32>
    %32 = arith.addf %26, %31 : vector<64x8xf32>
    %33 = vector.shape_cast %32 : vector<64x8xf32> to vector<8x8x8xf32>
    %c0_23 = arith.constant 0 : index
    %c0_24 = arith.constant 0 : index
    %c0_25 = arith.constant 0 : index
    %c0_26 = arith.constant 0 : index
    %34 = vector.load %arg7[%c0_23, %c0_24, %c0_25, %c0_26] : memref<1x8x8x8xf32, #tpu.memory_space<vmem>>, vector<1x8x8x8xf32>
    %35 = vector.shape_cast %34 : vector<1x8x8x8xf32> to vector<8x8x8xf32>
    %36 = vector.shape_cast %33 : vector<8x8x8xf32> to vector<1x8x8x8xf32>
    tpu.vector_store %arg7[%c0_23, %c0_24, %c0_25, %c0_26], %36 {strides = array<i32>} : memref<1x8x8x8xf32, #tpu.memory_space<vmem>>, vector<1x8x8x8xf32>,
    return
  }
  func.func @transform_0(%arg0: i32) -> (i32, i32, i32, i32) {
    %c0_i32 = arith.constant 0 : i32
    %c0_i32_0 = arith.constant 0 : i32
    %c0_i32_1 = arith.constant 0 : i32
    %c0_i32_2 = arith.constant 0 : i32
    return %arg0, %c0_i32, %c0_i32_0, %c0_i32_1 : i32, i32, i32, i32
  }
  func.func @transform_1(%arg0: i32) -> (i32, i32, i32) {
    %c0_i32 = arith.constant 0 : i32
    %c0_i32_0 = arith.constant 0 : i32
    %c0_i32_1 = arith.constant 0 : i32
    %c0_i32_2 = arith.constant 0 : i32
    return %c0_i32, %c0_i32_0, %c0_i32_1 : i32, i32, i32
  }
  func.func @transform_2(%arg0: i32) -> (i32, i32, i32) {
    %c0_i32 = arith.constant 0 : i32
    %c0_i32_0 = arith.constant 0 : i32
    %c0_i32_1 = arith.constant 0 : i32
    %c0_i32_2 = arith.constant 0 : i32
    return %c0_i32, %c0_i32_0, %c0_i32_1 : i32, i32, i32
  }
  func.func @transform_3(%arg0: i32) -> (i32, i32, i32) {
    %c0_i32 = arith.constant 0 : i32
    %c0_i32_0 = arith.constant 0 : i32
    %c0_i32_1 = arith.constant 0 : i32
    %c0_i32_2 = arith.constant 0 : i32
    return %c0_i32, %c0_i32_0, %c0_i32_1 : i32, i32, i32
  }
  func.func @transform_4(%arg0: i32) -> (i32, i32, i32) {
    %c0_i32 = arith.constant 0 : i32
    %c0_i32_0 = arith.constant 0 : i32
    %c0_i32_1 = arith.constant 0 : i32
    %c0_i32_2 = arith.constant 0 : i32
    return %c0_i32, %c0_i32_0, %c0_i32_1 : i32, i32, i32
  }
  func.func @transform_5(%arg0: i32) -> (i32, i32, i32) {
    %c0_i32 = arith.constant 0 : i32
    %c0_i32_0 = arith.constant 0 : i32
    %c0_i32_1 = arith.constant 0 : i32
    %c0_i32_2 = arith.constant 0 : i32
    return %c0_i32, %c0_i32_0, %c0_i32_1 : i32, i32, i32
  }
  func.func @transform_6(%arg0: i32) -> (i32, i32, i32, i32) {
    %c0_i32 = arith.constant 0 : i32
    %c0_i32_0 = arith.constant 0 : i32
    %c0_i32_1 = arith.constant 0 : i32
    %c0_i32_2 = arith.constant 0 : i32
    return %arg0, %c0_i32, %c0_i32_0, %c0_i32_1 : i32, i32, i32, i32
  }
}

module attributes {stable_mosaic.version = 11 : i64} {
  func.func @kernel(%arg0: i32, %arg1: memref<1x8x8x4xf32, #tpu.memory_space<vmem>>, %arg2: memref<1x1x4xf32, #tpu.memory_space<vmem>>, %arg3: memref<1x1x4xf32, #tpu.memory_space<vmem>>, %arg4: memref<1x4x8xbf16, #tpu.memory_space<vmem>>, %arg5: memref<1x8x8x8xf32, #tpu.memory_space<vmem>>) attributes {dimension_semantics = [#tpu.dimension_semantics<parallel>], iteration_bounds = array<i64: 2>, scalar_prefetch = 0 : i64, scratch_operands = 0 : i64, tpu.core_type = #tpu.core_type<tc>, window_params = [{transform_indices = @transform_0, window_bounds = array<i64: 1, 8, 8, 4>}, {pipeline_mode = #tpu.pipeline_mode<synchronous>, transform_indices = @transform_1, window_bounds = array<i64: 1, 1, 4>}, {pipeline_mode = #tpu.pipeline_mode<synchronous>, transform_indices = @transform_2, window_bounds = array<i64: 1, 1, 4>}, {pipeline_mode = #tpu.pipeline_mode<synchronous>, transform_indices = @transform_3, window_bounds = array<i64: 1, 4, 8>}, {transform_indices = @transform_4, window_bounds = array<i64: 1, 8, 8, 8>}]} {
    %c0 = arith.constant 0 : index
    %c0_0 = arith.constant 0 : index
    %c0_1 = arith.constant 0 : index
    %c0_2 = arith.constant 0 : index
    %0 = vector.load %arg1[%c0, %c0_0, %c0_1, %c0_2] : memref<1x8x8x4xf32, #tpu.memory_space<vmem>>, vector<1x8x8x4xf32>
    %1 = vector.shape_cast %0 : vector<1x8x8x4xf32> to vector<8x8x4xf32>
    %c0_3 = arith.constant 0 : index
    %c0_4 = arith.constant 0 : index
    %c0_5 = arith.constant 0 : index
    %2 = vector.load %arg2[%c0_3, %c0_4, %c0_5] : memref<1x1x4xf32, #tpu.memory_space<vmem>>, vector<1x1x4xf32>
    %3 = vector.broadcast %2 : vector<1x1x4xf32> to vector<8x8x4xf32>
    %4 = arith.mulf %1, %3 : vector<8x8x4xf32>
    %c0_6 = arith.constant 0 : index
    %c0_7 = arith.constant 0 : index
    %c0_8 = arith.constant 0 : index
    %5 = vector.load %arg3[%c0_6, %c0_7, %c0_8] : memref<1x1x4xf32, #tpu.memory_space<vmem>>, vector<1x1x4xf32>
    %6 = vector.broadcast %5 : vector<1x1x4xf32> to vector<8x8x4xf32>
    %7 = arith.addf %4, %6 : vector<8x8x4xf32>
    %8 = arith.truncf %7 : vector<8x8x4xf32> to vector<8x8x4xbf16>
    %cst = arith.constant 0.000000e+00 : f32
    %9 = vector.broadcast %cst : f32 to vector<64x8xf32>
    %10 = vector.shape_cast %8 : vector<8x8x4xbf16> to vector<64x4xbf16>
    %c0_9 = arith.constant 0 : index
    %c0_10 = arith.constant 0 : index
    %c0_11 = arith.constant 0 : index
    %11 = vector.load %arg4[%c0_9, %c0_10, %c0_11] : memref<1x4x8xbf16, #tpu.memory_space<vmem>>, vector<1x4x8xbf16>
    %12 = vector.shape_cast %11 : vector<1x4x8xbf16> to vector<4x8xbf16>
    %cst_12 = arith.constant dense<0.000000e+00> : vector<64x8xf32>
    %13 = tpu.matmul %10, %12, %cst_12 {dimension_numbers = #tpu.dot_dimension_numbers<[1], [0], [0], [1], [0, 0, 1, 1], [], []>} : vector<64x4xbf16>, vector<4x8xbf16>, vector<64x8xf32> -> vector<64x8xf32>
    %14 = arith.addf %9, %13 : vector<64x8xf32>
    %15 = vector.shape_cast %14 : vector<64x8xf32> to vector<8x8x8xf32>
    %c0_13 = arith.constant 0 : index
    %c0_14 = arith.constant 0 : index
    %c0_15 = arith.constant 0 : index
    %c0_16 = arith.constant 0 : index
    %16 = vector.load %arg5[%c0_13, %c0_14, %c0_15, %c0_16] : memref<1x8x8x8xf32, #tpu.memory_space<vmem>>, vector<1x8x8x8xf32>
    %17 = vector.shape_cast %16 : vector<1x8x8x8xf32> to vector<8x8x8xf32>
    %18 = vector.shape_cast %15 : vector<8x8x8xf32> to vector<1x8x8x8xf32>
    tpu.vector_store %arg5[%c0_13, %c0_14, %c0_15, %c0_16], %18 {strides = array<i32>} : memref<1x8x8x8xf32, #tpu.memory_space<vmem>>, vector<1x8x8x8xf32>,
    return
  }
  func.func @transform_0(%arg0: i32) -> (i32, i32, i32, i32) {
    %c0_i32 = arith.constant 0 : i32
    %c0_i32_0 = arith.constant 0 : i32
    %c0_i32_1 = arith.constant 0 : i32
    %c0_i32_2 = arith.constant 0 : i32
    return %arg0, %c0_i32, %c0_i32_0, %c0_i32_1 : i32, i32, i32, i32
  }
  func.func @transform_1(%arg0: i32) -> (i32, i32, i32) {
    %c0_i32 = arith.constant 0 : i32
    %c0_i32_0 = arith.constant 0 : i32
    %c0_i32_1 = arith.constant 0 : i32
    %c0_i32_2 = arith.constant 0 : i32
    return %c0_i32, %c0_i32_0, %c0_i32_1 : i32, i32, i32
  }
  func.func @transform_2(%arg0: i32) -> (i32, i32, i32) {
    %c0_i32 = arith.constant 0 : i32
    %c0_i32_0 = arith.constant 0 : i32
    %c0_i32_1 = arith.constant 0 : i32
    %c0_i32_2 = arith.constant 0 : i32
    return %c0_i32, %c0_i32_0, %c0_i32_1 : i32, i32, i32
  }
  func.func @transform_3(%arg0: i32) -> (i32, i32, i32) {
    %c0_i32 = arith.constant 0 : i32
    %c0_i32_0 = arith.constant 0 : i32
    %c0_i32_1 = arith.constant 0 : i32
    %c0_i32_2 = arith.constant 0 : i32
    return %c0_i32, %c0_i32_0, %c0_i32_1 : i32, i32, i32
  }
  func.func @transform_4(%arg0: i32) -> (i32, i32, i32, i32) {
    %c0_i32 = arith.constant 0 : i32
    %c0_i32_0 = arith.constant 0 : i32
    %c0_i32_1 = arith.constant 0 : i32
    %c0_i32_2 = arith.constant 0 : i32
    return %arg0, %c0_i32, %c0_i32_0, %c0_i32_1 : i32, i32, i32, i32
  }
}

module attributes {stable_mosaic.version = 11 : i64} {
  func.func @kernel(%arg0: i32, %arg1: memref<1x10x10x8xf32, #tpu.memory_space<vmem>>, %arg2: memref<1x1x8xf32, #tpu.memory_space<vmem>>, %arg3: memref<1x1x8xf32, #tpu.memory_space<vmem>>, %arg4: memref<3x24x8xbf16, #tpu.memory_space<vmem>>, %arg5: memref<10x1x8xf32, #tpu.memory_space<vmem>>, %arg6: memref<1x10x8xf32, #tpu.memory_space<vmem>>, %arg7: memref<1x8x8x8xf32, #tpu.memory_space<vmem>>, %arg8: memref<1x8x8x8xf32, #tpu.memory_space<vmem>>) attributes {dimension_semantics = [#tpu.dimension_semantics<parallel>], iteration_bounds = array<i64: 2>, scalar_prefetch = 0 : i64, scratch_operands = 0 : i64, tpu.core_type = #tpu.core_type<tc>, window_params = [{transform_indices = @transform_0, window_bounds = array<i64: 1, 10, 10, 8>}, {pipeline_mode = #tpu.pipeline_mode<synchronous>, transform_indices = @transform_1, window_bounds = array<i64: 1, 1, 8>}, {pipeline_mode = #tpu.pipeline_mode<synchronous>, transform_indices = @transform_2, window_bounds = array<i64: 1, 1, 8>}, {pipeline_mode = #tpu.pipeline_mode<synchronous>, transform_indices = @transform_3, window_bounds = array<i64: 3, 24, 8>}, {pipeline_mode = #tpu.pipeline_mode<synchronous>, transform_indices = @transform_4, window_bounds = array<i64: 10, 1, 8>}, {pipeline_mode = #tpu.pipeline_mode<synchronous>, transform_indices = @transform_5, window_bounds = array<i64: 1, 10, 8>}, {transform_indices = @transform_6, window_bounds = array<i64: 1, 8, 8, 8>}, {transform_indices = @transform_7, window_bounds = array<i64: 1, 8, 8, 8>}]} {
    %c0 = arith.constant 0 : index
    %c0_0 = arith.constant 0 : index
    %c0_1 = arith.constant 0 : index
    %c0_2 = arith.constant 0 : index
    %0 = vector.load %arg1[%c0, %c0_0, %c0_1, %c0_2] : memref<1x10x10x8xf32, #tpu.memory_space<vmem>>, vector<1x10x10x8xf32>
    %1 = vector.shape_cast %0 : vector<1x10x10x8xf32> to vector<10x10x8xf32>
    %c0_3 = arith.constant 0 : index
    %c0_4 = arith.constant 0 : index
    %c0_5 = arith.constant 0 : index
    %2 = vector.load %arg2[%c0_3, %c0_4, %c0_5] : memref<1x1x8xf32, #tpu.memory_space<vmem>>, vector<1x1x8xf32>
    %3 = vector.broadcast %2 : vector<1x1x8xf32> to vector<10x10x8xf32>
    %4 = arith.mulf %1, %3 : vector<10x10x8xf32>
    %c0_6 = arith.constant 0 : index
    %c0_7 = arith.constant 0 : index
    %c0_8 = arith.constant 0 : index
    %5 = vector.load %arg3[%c0_6, %c0_7, %c0_8] : memref<1x1x8xf32, #tpu.memory_space<vmem>>, vector<1x1x8xf32>
    %6 = vector.broadcast %5 : vector<1x1x8xf32> to vector<10x10x8xf32>
    %7 = arith.addf %4, %6 : vector<10x10x8xf32>
    %cst = arith.constant 0.000000e+00 : f32
    %8 = vector.broadcast %cst : f32 to vector<10x10x8xf32>
    %9 = arith.maximumf %7, %8 : vector<10x10x8xf32>
    %c0_9 = arith.constant 0 : index
    %c0_10 = arith.constant 0 : index
    %c0_11 = arith.constant 0 : index
    %10 = vector.load %arg5[%c0_9, %c0_10, %c0_11] : memref<10x1x8xf32, #tpu.memory_space<vmem>>, vector<10x1x8xf32>
    %11 = vector.broadcast %10 : vector<10x1x8xf32> to vector<10x10x8xf32>
    %12 = arith.mulf %9, %11 : vector<10x10x8xf32>
    %c0_12 = arith.constant 0 : index
    %c0_13 = arith.constant 0 : index
    %c0_14 = arith.constant 0 : index
    %13 = vector.load %arg6[%c0_12, %c0_13, %c0_14] : memref<1x10x8xf32, #tpu.memory_space<vmem>>, vector<1x10x8xf32>
    %14 = vector.broadcast %13 : vector<1x10x8xf32> to vector<10x10x8xf32>
    %15 = arith.mulf %12, %14 : vector<10x10x8xf32>
    %16 = arith.truncf %15 : vector<10x10x8xf32> to vector<10x10x8xbf16>
    %17 = vector.extract_strided_slice %16 {offsets = [0, 0, 0], sizes = [10, 8, 8], strides = [1, 1, 1]} : vector<10x10x8xbf16> to vector<10x8x8xbf16>
    %18 = vector.extract_strided_slice %16 {offsets = [0, 1, 0], sizes = [10, 8, 8], strides = [1, 1, 1]} : vector<10x10x8xbf16> to vector<10x8x8xbf16>
    %19 = vector.extract_strided_slice %16 {offsets = [0, 2, 0], sizes = [10, 8, 8], strides = [1, 1, 1]} : vector<10x10x8xbf16> to vector<10x8x8xbf16>
    %20 = tpu.concatenate %17, %18, %19 in 2 : vector<10x8x8xbf16>, vector<10x8x8xbf16>, vector<10x8x8xbf16> -> vector<10x8x24xbf16>
    %cst_15 = arith.constant 0.000000e+00 : f32
    %21 = vector.broadcast %cst_15 : f32 to vector<64x8xf32>
    %22 = vector.extract_strided_slice %20 {offsets = [0, 0, 0], sizes = [8, 8, 24], strides = [1, 1, 1]} : vector<10x8x24xbf16> to vector<8x8x24xbf16>
    %23 = vector.shape_cast %22 : vector<8x8x24xbf16> to vector<64x24xbf16>
    %c0_16 = arith.constant 0 : index
    %c0_17 = arith.constant 0 : index
    %c0_18 = arith.constant 0 : index
    %24 = vector.load %arg4[%c0_16, %c0_17, %c0_18] : memref<3x24x8xbf16, #tpu.memory_space<vmem>>, vector<1x24x8xbf16>
    %25 = vector.shape_cast %24 : vector<1x24x8xbf16> to vector<24x8xbf16>
    %cst_19 = arith.constant dense<0.000000e+00> : vector<64x8xf32>
    %26 = tpu.matmul %23, %25, %cst_19 {dimension_numbers = #tpu.dot_dimension_numbers<[1], [0], [0], [1], [0, 0, 1, 1], [], []>} : vector<64x24xbf16>, vector<24x8xbf16>, vector<64x8xf32> -> vector<64x8xf32>
    %27 = arith.addf %21, %26 : vector<64x8xf32>
    %28 = vector.extract_strided_slice %20 {offsets = [1, 0, 0], sizes = [8, 8, 24], strides = [1, 1, 1]} : vector<10x8x24xbf16> to vector<8x8x24xbf16>
    %29 = vector.shape_cast %28 : vector<8x8x24xbf16> to vector<64x24xbf16>
    %c1 = arith.constant 1 : index
    %c0_20 = arith.constant 0 : index
    %c0_21 = arith.constant 0 : index
    %30 = vector.load %arg4[%c1, %c0_20, %c0_21] : memref<3x24x8xbf16, #tpu.memory_space<vmem>>, vector<1x24x8xbf16>
    %31 = vector.shape_cast %30 : vector<1x24x8xbf16> to vector<24x8xbf16>
    %cst_22 = arith.constant dense<0.000000e+00> : vector<64x8xf32>
    %32 = tpu.matmul %29, %31, %cst_22 {dimension_numbers = #tpu.dot_dimension_numbers<[1], [0], [0], [1], [0, 0, 1, 1], [], []>} : vector<64x24xbf16>, vector<24x8xbf16>, vector<64x8xf32> -> vector<64x8xf32>
    %33 = arith.addf %27, %32 : vector<64x8xf32>
    %34 = vector.extract_strided_slice %20 {offsets = [2, 0, 0], sizes = [8, 8, 24], strides = [1, 1, 1]} : vector<10x8x24xbf16> to vector<8x8x24xbf16>
    %35 = vector.shape_cast %34 : vector<8x8x24xbf16> to vector<64x24xbf16>
    %c2 = arith.constant 2 : index
    %c0_23 = arith.constant 0 : index
    %c0_24 = arith.constant 0 : index
    %36 = vector.load %arg4[%c2, %c0_23, %c0_24] : memref<3x24x8xbf16, #tpu.memory_space<vmem>>, vector<1x24x8xbf16>
    %37 = vector.shape_cast %36 : vector<1x24x8xbf16> to vector<24x8xbf16>
    %cst_25 = arith.constant dense<0.000000e+00> : vector<64x8xf32>
    %38 = tpu.matmul %35, %37, %cst_25 {dimension_numbers = #tpu.dot_dimension_numbers<[1], [0], [0], [1], [0, 0, 1, 1], [], []>} : vector<64x24xbf16>, vector<24x8xbf16>, vector<64x8xf32> -> vector<64x8xf32>
    %39 = arith.addf %33, %38 : vector<64x8xf32>
    %40 = vector.shape_cast %39 : vector<64x8xf32> to vector<8x8x8xf32>
    %c0_26 = arith.constant 0 : index
    %c0_27 = arith.constant 0 : index
    %c0_28 = arith.constant 0 : index
    %c0_29 = arith.constant 0 : index
    %41 = vector.load %arg7[%c0_26, %c0_27, %c0_28, %c0_29] : memref<1x8x8x8xf32, #tpu.memory_space<vmem>>, vector<1x8x8x8xf32>
    %42 = vector.shape_cast %41 : vector<1x8x8x8xf32> to vector<8x8x8xf32>
    %43 = arith.addf %40, %42 : vector<8x8x8xf32>
    %c0_30 = arith.constant 0 : index
    %c0_31 = arith.constant 0 : index
    %c0_32 = arith.constant 0 : index
    %c0_33 = arith.constant 0 : index
    %44 = vector.load %arg8[%c0_30, %c0_31, %c0_32, %c0_33] : memref<1x8x8x8xf32, #tpu.memory_space<vmem>>, vector<1x8x8x8xf32>
    %45 = vector.shape_cast %44 : vector<1x8x8x8xf32> to vector<8x8x8xf32>
    %46 = vector.shape_cast %43 : vector<8x8x8xf32> to vector<1x8x8x8xf32>
    tpu.vector_store %arg8[%c0_30, %c0_31, %c0_32, %c0_33], %46 {strides = array<i32>} : memref<1x8x8x8xf32, #tpu.memory_space<vmem>>, vector<1x8x8x8xf32>,
    return
  }
  func.func @transform_0(%arg0: i32) -> (i32, i32, i32, i32) {
    %c0_i32 = arith.constant 0 : i32
    %c0_i32_0 = arith.constant 0 : i32
    %c0_i32_1 = arith.constant 0 : i32
    %c0_i32_2 = arith.constant 0 : i32
    return %arg0, %c0_i32, %c0_i32_0, %c0_i32_1 : i32, i32, i32, i32
  }
  func.func @transform_1(%arg0: i32) -> (i32, i32, i32) {
    %c0_i32 = arith.constant 0 : i32
    %c0_i32_0 = arith.constant 0 : i32
    %c0_i32_1 = arith.constant 0 : i32
    %c0_i32_2 = arith.constant 0 : i32
    return %c0_i32, %c0_i32_0, %c0_i32_1 : i32, i32, i32
  }
  func.func @transform_2(%arg0: i32) -> (i32, i32, i32) {
    %c0_i32 = arith.constant 0 : i32
    %c0_i32_0 = arith.constant 0 : i32
    %c0_i32_1 = arith.constant 0 : i32
    %c0_i32_2 = arith.constant 0 : i32
    return %c0_i32, %c0_i32_0, %c0_i32_1 : i32, i32, i32
  }
  func.func @transform_3(%arg0: i32) -> (i32, i32, i32) {
    %c0_i32 = arith.constant 0 : i32
    %c0_i32_0 = arith.constant 0 : i32
    %c0_i32_1 = arith.constant 0 : i32
    %c0_i32_2 = arith.constant 0 : i32
    return %c0_i32, %c0_i32_0, %c0_i32_1 : i32, i32, i32
  }
  func.func @transform_4(%arg0: i32) -> (i32, i32, i32) {
    %c0_i32 = arith.constant 0 : i32
    %c0_i32_0 = arith.constant 0 : i32
    %c0_i32_1 = arith.constant 0 : i32
    %c0_i32_2 = arith.constant 0 : i32
    return %c0_i32, %c0_i32_0, %c0_i32_1 : i32, i32, i32
  }
  func.func @transform_5(%arg0: i32) -> (i32, i32, i32) {
    %c0_i32 = arith.constant 0 : i32
    %c0_i32_0 = arith.constant 0 : i32
    %c0_i32_1 = arith.constant 0 : i32
    %c0_i32_2 = arith.constant 0 : i32
    return %c0_i32, %c0_i32_0, %c0_i32_1 : i32, i32, i32
  }
  func.func @transform_6(%arg0: i32) -> (i32, i32, i32, i32) {
    %c0_i32 = arith.constant 0 : i32
    %c0_i32_0 = arith.constant 0 : i32
    %c0_i32_1 = arith.constant 0 : i32
    %c0_i32_2 = arith.constant 0 : i32
    return %arg0, %c0_i32, %c0_i32_0, %c0_i32_1 : i32, i32, i32, i32
  }
  func.func @transform_7(%arg0: i32) -> (i32, i32, i32, i32) {
    %c0_i32 = arith.constant 0 : i32
    %c0_i32_0 = arith.constant 0 : i32
    %c0_i32_1 = arith.constant 0 : i32
    %c0_i32_2 = arith.constant 0 : i32
    return %arg0, %c0_i32, %c0_i32_0, %c0_i32_1 : i32, i32, i32, i32
  }
}

</mosaic_0001>

<llo_original>
// kernel: tile.13
$region0: #{tile.13}
  #allocation0 [shape = 's32[1]{0}', space=sflag, size = 0x4, scoped, tag = 'scoped memory for tile.13']
  %s0 = inlined_call_operand.vmem [shape: f32[4], index: 0, kind: input, shape index: {}]
  %s1 = inlined_call_operand.vmem [shape: f32[4,4], index: 1, kind: output, shape index: {}]
  // Predicated region
  $region2: #{tile.13} parent=0 // pred_check
    _
  $region3: #{tile.13} parent=0 // pred_check_branch
    %3 = sbr.rel (0) target = $region5
  $region4: #{tile.13} parent=0 // pred_region
    _
  $region5: #{tile.13} parent=0 // pred_fallthru
    _
  %v4 = vld [vmem:[%s0] ss:$0 sm:$0xff]
  %5 = vst [vmem:[%s1] sm:$0xf] %v4

// kernel: tile.18
$region0: #{tile.18}
  %s0 = inlined_call_operand.vmem [shape: f32[4,4], index: 0, kind: input, shape index: {}]
  %s1 = inlined_call_operand.vmem [shape: f32[1,1,16], index: 1, kind: output, shape index: {}]
  $region1: #{tile.18} parent=0
    #allocation0 [shape = 'u8[4096]{0}', space=vmem, size = 0x1000, scoped, tag = 'scoped mem for output reshape']
    #allocation1 [shape = 'u8[4096]{0}', space=vmem, size = 0x1000, scoped, tag = 'scoped mem for input reshape']
    %s3 = sshllo.u32 0, 4
    %v4 = vld [vmem:[%s0] sm:%s3]
    %5 = vst [vmem:[#allocation1] sm:%s3] %v4
    %v6 = vld [vmem:[#allocation1] sm:$0x1]
    %vm7 = vcmask 31744
    %8 = vst.msk [vmem:[#allocation0] sm:$0x1] %vm7, %v6
    %s9 = scalar_lea.vmem [#allocation1], 3
    %v10 = vld [vmem:[%s9] sm:$0x1]
    %11 = vrot.lane.b32.xlu0 %v10, 12
    %v12 = vpop.permute.xlu0 %11
    %vm13 = vcmask 130144
    %14 = vst.msk [vmem:[#allocation0] sm:$0x1] %vm13, %v12
    %s15 = scalar_lea.vmem [#allocation1], 2
    %v16 = vld [vmem:[%s15] sm:$0x1]
    %17 = vrot.lane.b32.xlu0 %v16, 8
    %v18 = vpop.permute.xlu0 %17
    %vm19 = vcmask 97344
    %20 = vst.msk [vmem:[#allocation0] sm:$0x1] %vm19, %v18
    %s21 = scalar_lea.vmem [#allocation1], 1
    %v22 = vld [vmem:[%s21] sm:$0x1]
    %23 = vrot.lane.b32.xlu0 %v22, 4
    %v24 = vpop.permute.xlu0 %23
    %vm25 = vcmask 64544
    %26 = vst.msk [vmem:[#allocation0] sm:$0x1] %vm25, %v24
    %s28 = sshllo.u32 0, 1
    %v30 = vld [vmem:[#allocation0] sm:%s28]
    %s31 = sshllo.u32 0, 1
    %32 = vst [vmem:[%s1] sm:%s31] %v30

// kernel: preact_unit_forward.3
$region0: #{preact_unit_forward.3}
  #allocation0 [shape = 'u32[]', space=smem, size = 0x4, offset = 0x4, fixed_abs, tag = 'smem constant byte address 0x4 - core index']
  #allocation1 [shape = 'u32[144,128]{1,0:T(1,128)}', space=vmem, size = 0x12000, scoped, tag = 'internal scratch']
  %s0 = inlined_call_operand.vmem [shape: f32[2,8,8,4], index: 0, kind: input, shape index: {}]
  %s1 = inlined_call_operand.vmem [shape: f32[1,1,4], index: 1, kind: input, shape index: {}]
  %s2 = inlined_call_operand.vmem [shape: f32[1,1,4], index: 2, kind: input, shape index: {}]
  %s3 = inlined_call_operand.vmem [shape: bf16[1,4,8], index: 3, kind: input, shape index: {}]
  %s4 = inlined_call_operand.vmem [shape: f32[2,8,8,8], index: 4, kind: output, shape index: {}]
  %s5 = sld [smem:[#allocation0]]
  $region49: #{preact_unit_forward.3} parent=0
    _
  %s7 = ssub.s32 1, %s5
  %s8 = scalar_select 0, %s7, %s5
  loop: start=0, step=1, limit=4
  $region2: #{preact_unit_forward.3} parent=0 // loop_pre_header
    _
  $region3: #{preact_unit_forward.3} parent=0 // loop_header
    %s10 = sphi 0, %s14
    %p11 = scmp.ge.s32.totalorder %s10, 4
    %s20 = sphi 0, %s22
    %s23 = sphi 0, %s20
    %s24 = sphi 0, %s23
    %s40 = sphi 0, %s24
    %s44 = sphi 0, %s44
    %s46 = sphi 0, %s44
    %s47 = sphi 0, %s46
    %s61 = sphi 0, %s47
    %s65 = sphi 0, %s65
    %s67 = sphi 0, %s65
    %s68 = sphi 0, %s67
    %s82 = sphi 0, %s68
    %s86 = sphi 0, %s86
    %s88 = sphi 0, %s86
    %s89 = sphi 0, %s88
    %s103 = sphi 0, %s89
    %s109 = sphi 0, %s111
    %s112 = sphi 0, %s109
    %s113 = sphi 0, %s112
    %s129 = sphi 0, %s113
  $region4: #{preact_unit_forward.3} parent=0 // loop_header_branch
    %13 = sbr.rel (%p11) target = $region8
  $region5: #{preact_unit_forward.3} parent=0 // loop_body
    %s15 = ssub.s32 %s10, 1
    %s16 = ssub.s32 %s10, 2
    %s17 = sadd.s32 %s10, 1
    %s18 = ssub.s32 %s10, %s17
    %p19 = scmp.eq.s32.totalorder %s18, 0
    %s21 = sadd.s32 %s20, 1
    %s22 = scalar_select %p19, %s20, %s21
    %p25 = pneg %p19
    %p26 = scmp.eq.s32.totalorder %s10, 1
    %p27 = por %p25, %p26
    %p28 = scmp.ne.s32.totalorder %s20, %s23
    %p29 = scmp.eq.s32.totalorder %s10, 0
    %p30 = por %p28, %p29
    %p31 = scmp.ne.s32.totalorder %s20, %s23
    %p32 = scmp.eq.s32.totalorder %s15, 1
    %p33 = por %p31, %p32
    %p34 = scmp.ne.s32.totalorder %s23, %s24
    %p35 = scmp.eq.s32.totalorder %s15, 0
    %p36 = por %p34, %p35
    %p37 = scmp.ne.s32.totalorder %s23, %s24
    %p38 = scmp.eq.s32.totalorder %s16, 1
    %p39 = por %p37, %p38
    %p41 = scmp.ne.s32.totalorder %s24, %s40
    %p42 = scmp.eq.s32.totalorder %s16, 0
    %p43 = por %p41, %p42
    %s45 = sadd.s32 %s44, 1
    %p48 = scmp.eq.s32.totalorder %s10, 1
    %p49 = scmp.ne.s32.totalorder %s44, %s46
    %p50 = scmp.eq.s32.totalorder %s10, 0
    %p51 = por %p49, %p50
    %p52 = scmp.ne.s32.totalorder %s44, %s46
    %p53 = scmp.eq.s32.totalorder %s15, 1
    %p54 = por %p52, %p53
    %p55 = scmp.ne.s32.totalorder %s46, %s47
    %p56 = scmp.eq.s32.totalorder %s15, 0
    %p57 = por %p55, %p56
    %p58 = scmp.ne.s32.totalorder %s46, %s47
    %p59 = scmp.eq.s32.totalorder %s16, 1
    %p60 = por %p58, %p59
    %p62 = scmp.ne.s32.totalorder %s47, %s61
    %p63 = scmp.eq.s32.totalorder %s16, 0
    %p64 = por %p62, %p63
    %s66 = sadd.s32 %s65, 1
    %p69 = scmp.eq.s32.totalorder %s10, 1
    %p70 = scmp.ne.s32.totalorder %s65, %s67
    %p71 = scmp.eq.s32.totalorder %s10, 0
    %p72 = por %p70, %p71
    %p73 = scmp.ne.s32.totalorder %s65, %s67
    %p74 = scmp.eq.s32.totalorder %s15, 1
    %p75 = por %p73, %p74
    %p76 = scmp.ne.s32.totalorder %s67, %s68
    %p77 = scmp.eq.s32.totalorder %s15, 0
    %p78 = por %p76, %p77
    %p79 = scmp.ne.s32.totalorder %s67, %s68
    %p80 = scmp.eq.s32.totalorder %s16, 1
    %p81 = por %p79, %p80
    %p83 = scmp.ne.s32.totalorder %s68, %s82
    %p84 = scmp.eq.s32.totalorder %s16, 0
    %p85 = por %p83, %p84
    %s87 = sadd.s32 %s86, 1
    %p90 = scmp.eq.s32.totalorder %s10, 1
    %p91 = scmp.ne.s32.totalorder %s86, %s88
    %p92 = scmp.eq.s32.totalorder %s10, 0
    %p93 = por %p91, %p92
    %p94 = scmp.ne.s32.totalorder %s86, %s88
    %p95 = scmp.eq.s32.totalorder %s15, 1
    %p96 = por %p94, %p95
    %p97 = scmp.ne.s32.totalorder %s88, %s89
    %p98 = scmp.eq.s32.totalorder %s15, 0
    %p99 = por %p97, %p98
    %p100 = scmp.ne.s32.totalorder %s88, %s89
    %p101 = scmp.eq.s32.totalorder %s16, 1
    %p102 = por %p100, %p101
    %p104 = scmp.ne.s32.totalorder %s89, %s103
    %p105 = scmp.eq.s32.totalorder %s16, 0
    %p106 = por %p104, %p105
    %s107 = ssub.s32 %s10, %s17
    %p108 = scmp.eq.s32.totalorder %s107, 0
    %s110 = sadd.s32 %s109, 1
    %s111 = scalar_select %p108, %s109, %s110
    %p114 = pneg %p108
    %p115 = scmp.eq.s32.totalorder %s10, 1
    %p116 = por %p114, %p115
    %p117 = scmp.ne.s32.totalorder %s109, %s112
    %p118 = scmp.eq.s32.totalorder %s10, 0
    %p119 = por %p117, %p118
    %p120 = scmp.ne.s32.totalorder %s109, %s112
    %p121 = scmp.eq.s32.totalorder %s15, 1
    %p122 = por %p120, %p121
    %p123 = scmp.ne.s32.totalorder %s112, %s113
    %p124 = scmp.eq.s32.totalorder %s15, 0
    %p125 = por %p123, %p124
    %p126 = scmp.ne.s32.totalorder %s112, %s113
    %p127 = scmp.eq.s32.totalorder %s16, 1
    %p128 = por %p126, %p127
    %p130 = scmp.ne.s32.totalorder %s113, %s129
    %p131 = scmp.eq.s32.totalorder %s16, 0
    %p132 = por %p130, %p131
    %p133 = scmp.le.s32.totalorder 1, %s10
    %p134 = scmp.lt.s32.totalorder %s10, 3
    %p135 = pnand %p133, %p134
    %p136 = pneg %p135
    // Predicated region
    $region9: #{preact_unit_forward.3} parent=5 // pred_check
      _
    $region10: #{preact_unit_forward.3} parent=5 // pred_check_branch
      %138 = sbr.rel (%p135) target = $region12
    $region11: #{preact_unit_forward.3} parent=5 // pred_region
      %s139 = ssub.s32 %s10, 1
      // Predicated region
      $region13: #{preact_unit_forward.3} parent=11 // pred_check
        %p140 = pneg %p57
      $region14: #{preact_unit_forward.3} parent=11 // pred_check_branch
        %142 = sbr.rel (%p140) target = $region16
      $region15: #{preact_unit_forward.3} parent=11 // pred_region
        _
      $region16: #{preact_unit_forward.3} parent=11 // pred_fallthru
        _
      // Predicated region
      $region17: #{preact_unit_forward.3} parent=11 // pred_check
        %p143 = pneg %p78
      $region18: #{preact_unit_forward.3} parent=11 // pred_check_branch
        %145 = sbr.rel (%p143) target = $region20
      $region19: #{preact_unit_forward.3} parent=11 // pred_region
        _
      $region20: #{preact_unit_forward.3} parent=11 // pred_fallthru
        _
      // Predicated region
      $region21: #{preact_unit_forward.3} parent=11 // pred_check
        %p146 = pneg %p99
      $region22: #{preact_unit_forward.3} parent=11 // pred_check_branch
        %148 = sbr.rel (%p146) target = $region24
      $region23: #{preact_unit_forward.3} parent=11 // pred_region
        _
      $region24: #{preact_unit_forward.3} parent=11 // pred_fallthru
        _
    $region12: #{preact_unit_forward.3} parent=5 // pred_fallthru
      _
    %p149 = scmp.lt.s32.totalorder %s10, 2
    // Predicated region
    $region25: #{preact_unit_forward.3} parent=5 // pred_check
      %p150 = pneg %p149
    $region26: #{preact_unit_forward.3} parent=5 // pred_check_branch
      %152 = sbr.rel (%p150) target = $region28
    $region27: #{preact_unit_forward.3} parent=5 // pred_region
      // Predicated region
      $region29: #{preact_unit_forward.3} parent=27 // pred_check
        %p153 = pneg %p30
      $region30: #{preact_unit_forward.3} parent=27 // pred_check_branch
        %155 = sbr.rel (%p153) target = $region32
      $region31: #{preact_unit_forward.3} parent=27 // pred_region
        %p156 = scmp.lt.s32.totalorder %s10, 1
        %s157 = scalar_select %p156, %s10, 1
        %s158 = smul.addr %s157, 8
        %s159 = smul.addr %s158, 8
        %s160 = scalar_lea.vmem %s0, %s159
      $region32: #{preact_unit_forward.3} parent=27 // pred_fallthru
        _
    $region28: #{preact_unit_forward.3} parent=5 // pred_fallthru
      _
    %p161 = scmp.le.s32.totalorder 1, %s10
    %p162 = scmp.lt.s32.totalorder %s10, 3
    %p163 = pnand %p161, %p162
    %p164 = pneg %p163
    // Predicated region
    $region33: #{preact_unit_forward.3} parent=5 // pred_check
      _
    $region34: #{preact_unit_forward.3} parent=5 // pred_check_branch
      %166 = sbr.rel (%p163) target = $region36
    $region35: #{preact_unit_forward.3} parent=5 // pred_region
      %s167 = ssub.s32 %s10, 1
      %p168 = scmp.lt.s32.totalorder %s15, 1
      %s169 = scalar_select %p168, %s15, 1
      %s170 = smul.addr %s169, 8
      %s171 = smul.addr %s170, 8
      %s172 = scalar_lea.vmem %s0, %s171
      %p173 = pneg %p36
      %p174 = pneg %p33
      %p175 = pneg %p57
      %p176 = pneg %p54
      %p177 = pneg %p78
      %p178 = pneg %p75
      %p179 = pneg %p99
      %p180 = pneg %p96
      %p181 = pneg %p125
      %p182 = pneg %p122
      %p183 = scmp.lt.s32.totalorder %s15, 1
      %s184 = scalar_select %p183, %s15, 1
      %s185 = smul.addr %s184, 8
      %s186 = smul.addr %s185, 8
      %s187 = scalar_lea.vmem %s4, %s186
      %p188 = scmp.lt.s32.totalorder %s15, 1
      %s189 = scalar_select %p188, %s15, 1
      %s190 = smul.addr %s189, 8
      %s191 = smul.addr %s190, 8
      %s192 = scalar_lea.vmem %s0, %s191
      %p193 = scmp.lt.s32.totalorder %s15, 1
      %s194 = scalar_select %p193, %s15, 1
      %s195 = smul.addr %s194, 8
      %s196 = smul.addr %s195, 8
      %s197 = scalar_lea.vmem %s4, %s196
      %v199 = vld [vmem:[%s192] sm:$0xff]
      %v200 = vld [vmem:[%s192 + $0x8] sm:$0xff]
      %v201 = vld [vmem:[%s192 + $0x10] sm:$0xff]
      %v202 = vld [vmem:[%s192 + $0x18] sm:$0xff]
      %v203 = vld [vmem:[%s192 + $0x20] sm:$0xff]
      %v204 = vld [vmem:[%s192 + $0x28] sm:$0xff]
      %v205 = vld [vmem:[%s192 + $0x30] sm:$0xff]
      %v206 = vld [vmem:[%s192 + $0x38] sm:$0xff]
      %v207 = vld [vmem:[%s1] sm:$0x1]
      %v209 = vlaneseq
      %v210 = vshrl.u32 %v209, 7
      %v211 = vsub.s32 0, %v210
      %v212 = vrot.slane %v207, %v211
      %v214 = vmul.f32 %v199, %v212
      %v215 = vmul.f32 %v200, %v212
      %v216 = vmul.f32 %v201, %v212
      %v217 = vmul.f32 %v202, %v212
      %v218 = vmul.f32 %v203, %v212
      %v219 = vmul.f32 %v204, %v212
      %v220 = vmul.f32 %v205, %v212
      %v221 = vmul.f32 %v206, %v212
      %v222 = vld [vmem:[%s2] sm:$0x1]
      %v224 = vlaneseq
      %v225 = vshrl.u32 %v224, 7
      %v226 = vsub.s32 0, %v225
      %v227 = vrot.slane %v222, %v226
      %v229 = vadd.f32 %v214, %v227
      %v230 = vadd.f32 %v215, %v227
      %v231 = vadd.f32 %v216, %v227
      %v232 = vadd.f32 %v217, %v227
      %v233 = vadd.f32 %v218, %v227
      %v234 = vadd.f32 %v219, %v227
      %v235 = vadd.f32 %v220, %v227
      %v236 = vadd.f32 %v221, %v227
      %v237 = vpack.c.bf16 %v229, %v229
      %v238 = vpack.c.bf16 %v230, %v230
      %v239 = vpack.c.bf16 %v231, %v231
      %v240 = vpack.c.bf16 %v232, %v232
      %v241 = vpack.c.bf16 %v233, %v233
      %v242 = vpack.c.bf16 %v234, %v234
      %v243 = vpack.c.bf16 %v235, %v235
      %v244 = vpack.c.bf16 %v236, %v236
      %v245 = vld [vmem:[%s3] sm:$0x3]
      %v254 = vunpack.c.l.b16 %v237
      %v255 = vunpack.c.l.b16 %v238
      %v256 = vunpack.c.l.b16 %v239
      %v257 = vunpack.c.l.b16 %v240
      %v258 = vunpack.c.l.b16 %v241
      %v259 = vunpack.c.l.b16 %v242
      %v260 = vunpack.c.l.b16 %v243
      %v261 = vunpack.c.l.b16 %v244
      %v262 = vpack.c.b16 %v255, %v254
      %v263 = vpack.c.b16 %v257, %v256
      %v264 = vpack.c.b16 %v259, %v258
      %v265 = vpack.c.b16 %v261, %v260
      %vm266 = vcmask 31744
      %v268 = vsel %vm266, %v262, 0
      %v271 = vsel %vm266, %v263, 0
      %v274 = vsel %vm266, %v264, 0
      %v277 = vsel %vm266, %v265, 0
      %vm279 = vcmask 1041408
      %v281 = vsel %vm279, %v245, 0
      %283 = vmatprep.subr.bf16.mxu0 0
      %284 = vmatpush1.bf16.msra.mxu0 %v281
      %285 = vmatprep.subr.bf16.mxu0 0
      %286 = vmatpush1.bf16.msra.mxu0 0
      %287 = vmatprep.subr.bf16.mxu0 0
      %288 = vmatpush1.bf16.msra.mxu0 0
      %289 = vmatprep.subr.bf16.mxu0 0
      %290 = vmatpush1.bf16.msra.mxu0 0
      %291 = vmatprep.subr.bf16.mxu0 0
      %292 = vmatpush1.bf16.msra.mxu0 0
      %293 = vmatprep.subr.bf16.mxu0 0
      %294 = vmatpush1.bf16.msra.mxu0 0
      %295 = vmatprep.subr.bf16.mxu0 0
      %296 = vmatpush1.bf16.msra.mxu0 0
      %297 = vmatprep.subr.bf16.mxu0 0
      %298 = vmatpush1.bf16.msra.mxu0 0
      %299 = vmatprep.subr.bf16.mxu0 0
      %300 = vmatpush1.bf16.msra.mxu0 0
      %301 = vmatprep.subr.bf16.mxu0 0
      %302 = vmatpush1.bf16.msra.mxu0 0
      %303 = vmatprep.subr.bf16.mxu0 0
      %304 = vmatpush1.bf16.msra.mxu0 0
      %305 = vmatprep.subr.bf16.mxu0 0
      %306 = vmatpush1.bf16.msra.mxu0 0
      %307 = vmatprep.subr.bf16.mxu0 0
      %308 = vmatpush1.bf16.msra.mxu0 0
      %309 = vmatprep.subr.bf16.mxu0 0
      %310 = vmatpush1.bf16.msra.mxu0 0
      %311 = vmatprep.subr.bf16.mxu0 0
      %312 = vmatpush1.bf16.msra.mxu0 0
      %313 = vmatprep.subr.bf16.mxu0 0
      %314 = vmatpush1.bf16.msra.mxu0 0
      %315 = vmatprep.mubr.bf16.mxu0 0
      %316 = vmatmul.mubr.bf16.gmra.mrb[0].mxu0 %v268
      %v317 = vpop.f32.mrb[0].mxu0
      %v318 = vadd.f32 0.0, %v317
      %v319 = vpop.f32.mrb[0].mxu0
      %v320 = vpop.f32.mrb[0].mxu0
      %v321 = vadd.f32 0.0, %v320
      %v322 = vpop.f32.mrb[0].mxu0
      %323 = vmatprep.mubr.bf16.mxu0 0
      %324 = vmatmul.mubr.bf16.gmra.mrb[0].mxu0 %v271
      %v325 = vpop.f32.mrb[0].mxu0
      %v326 = vadd.f32 0.0, %v325
      %v327 = vpop.f32.mrb[0].mxu0
      %v328 = vpop.f32.mrb[0].mxu0
      %v329 = vadd.f32 0.0, %v328
      %v330 = vpop.f32.mrb[0].mxu0
      %331 = vmatprep.mubr.bf16.mxu0 0
      %332 = vmatmul.mubr.bf16.gmra.mrb[0].mxu0 %v274
      %v333 = vpop.f32.mrb[0].mxu0
      %v334 = vadd.f32 0.0, %v333
      %v335 = vpop.f32.mrb[0].mxu0
      %v336 = vpop.f32.mrb[0].mxu0
      %v337 = vadd.f32 0.0, %v336
      %v338 = vpop.f32.mrb[0].mxu0
      %339 = vmatprep.mubr.bf16.mxu0 0
      %340 = vmatmul.mubr.bf16.gmra.mrb[0].mxu0 %v277
      %v341 = vpop.f32.mrb[0].mxu0
      %v342 = vadd.f32 0.0, %v341
      %v343 = vpop.f32.mrb[0].mxu0
      %v344 = vpop.f32.mrb[0].mxu0
      %v345 = vadd.f32 0.0, %v344
      %v346 = vpop.f32.mrb[0].mxu0
      %347 = vdwg.mxu0
      %vm348 = vcmask 64512
      %349 = vst.msk [vmem:[%s197] sm:$0xff] %vm348, %v318
      %350 = vst.msk [vmem:[%s197 + $0x8] sm:$0xff] %vm348, %v321
      %351 = vst.msk [vmem:[%s197 + $0x10] sm:$0xff] %vm348, %v326
      %352 = vst.msk [vmem:[%s197 + $0x18] sm:$0xff] %vm348, %v329
      %353 = vst.msk [vmem:[%s197 + $0x20] sm:$0xff] %vm348, %v334
      %354 = vst.msk [vmem:[%s197 + $0x28] sm:$0xff] %vm348, %v337
      %355 = vst.msk [vmem:[%s197 + $0x30] sm:$0xff] %vm348, %v342
      %356 = vst.msk [vmem:[%s197 + $0x38] sm:$0xff] %vm348, %v345
      %p357 = scmp.lt.s32.totalorder %s15, 1
      %s358 = scalar_select %p357, %s15, 1
      %s359 = smul.addr %s358, 8
      %s360 = smul.addr %s359, 8
      %s361 = scalar_lea.vmem %s4, %s360
      // Predicated region
      $region37: #{preact_unit_forward.3} parent=35 // pred_check
        %p362 = pneg %p122
      $region38: #{preact_unit_forward.3} parent=35 // pred_check_branch
        %364 = sbr.rel (%p362) target = $region40
      $region39: #{preact_unit_forward.3} parent=35 // pred_region
        _
      $region40: #{preact_unit_forward.3} parent=35 // pred_fallthru
        _
    $region36: #{preact_unit_forward.3} parent=5 // pred_fallthru
      _
    %p365 = scmp.le.s32.totalorder 2, %s10
    // Predicated region
    $region41: #{preact_unit_forward.3} parent=5 // pred_check
      %p366 = pneg %p365
    $region42: #{preact_unit_forward.3} parent=5 // pred_check_branch
      %368 = sbr.rel (%p366) target = $region44
    $region43: #{preact_unit_forward.3} parent=5 // pred_region
      %s369 = ssub.s32 %s10, 2
      // Predicated region
      $region45: #{preact_unit_forward.3} parent=43 // pred_check
        %p370 = pneg %p128
      $region46: #{preact_unit_forward.3} parent=43 // pred_check_branch
        %372 = sbr.rel (%p370) target = $region48
      $region47: #{preact_unit_forward.3} parent=43 // pred_region
        %p373 = scmp.lt.s32.totalorder %s16, 1
        %s374 = scalar_select %p373, %s16, 1
        %s375 = smul.addr %s374, 8
        %s376 = smul.addr %s375, 8
        %s377 = scalar_lea.vmem %s4, %s376
      $region48: #{preact_unit_forward.3} parent=43 // pred_fallthru
        _
    $region44: #{preact_unit_forward.3} parent=5 // pred_fallthru
      _
  $region6: #{preact_unit_forward.3} parent=0 // loop_footer
    %s14 = sadd.s32 1, %s10
  $region7: #{preact_unit_forward.3} parent=0 // loop_footer_branch
    %9 = sbr.rel target = $region3
  $region8: #{preact_unit_forward.3} parent=0 // loop_exit
    _

// kernel: preact_unit_forward.4
$region0: #{preact_unit_forward.4}
  #allocation0 [shape = 'u32[]', space=smem, size = 0x4, offset = 0x4, fixed_abs, tag = 'smem constant byte address 0x4 - core index']
  #allocation1 [shape = 'u32[144,128]{1,0:T(1,128)}', space=vmem, size = 0x12000, scoped, tag = 'internal scratch']
  %s0 = inlined_call_operand.vmem [shape: f32[2,9,9,16], index: 0, kind: input, shape index: {}]
  %s1 = inlined_call_operand.vmem [shape: f32[1,1,16], index: 1, kind: input, shape index: {}]
  %s2 = inlined_call_operand.vmem [shape: f32[1,1,16], index: 2, kind: input, shape index: {}]
  %s3 = inlined_call_operand.vmem [shape: bf16[2,32,8], index: 3, kind: input, shape index: {}]
  %s4 = inlined_call_operand.vmem [shape: f32[9,1,16], index: 4, kind: input, shape index: {}]
  %s5 = inlined_call_operand.vmem [shape: f32[1,9,16], index: 5, kind: input, shape index: {}]
  %s6 = inlined_call_operand.vmem [shape: f32[2,8,8,8], index: 6, kind: output, shape index: {}]
  %s7 = sld [smem:[#allocation0]]
  $region57: #{preact_unit_forward.4} parent=0
    _
  %s9 = ssub.s32 1, %s7
  %s10 = scalar_select 0, %s9, %s7
  loop: start=0, step=1, limit=4
  $region2: #{preact_unit_forward.4} parent=0 // loop_pre_header
    _
  $region3: #{preact_unit_forward.4} parent=0 // loop_header
    %s12 = sphi 0, %s16
    %p13 = scmp.ge.s32.totalorder %s12, 4
    %s22 = sphi 0, %s24
    %s25 = sphi 0, %s22
    %s26 = sphi 0, %s25
    %s42 = sphi 0, %s26
    %s46 = sphi 0, %s46
    %s48 = sphi 0, %s46
    %s49 = sphi 0, %s48
    %s63 = sphi 0, %s49
    %s67 = sphi 0, %s67
    %s69 = sphi 0, %s67
    %s70 = sphi 0, %s69
    %s84 = sphi 0, %s70
    %s88 = sphi 0, %s88
    %s90 = sphi 0, %s88
    %s91 = sphi 0, %s90
    %s105 = sphi 0, %s91
    %s109 = sphi 0, %s109
    %s111 = sphi 0, %s109
    %s112 = sphi 0, %s111
    %s126 = sphi 0, %s112
    %s130 = sphi 0, %s130
    %s132 = sphi 0, %s130
    %s133 = sphi 0, %s132
    %s147 = sphi 0, %s133
    %s153 = sphi 0, %s155
    %s156 = sphi 0, %s153
    %s157 = sphi 0, %s156
    %s173 = sphi 0, %s157
  $region4: #{preact_unit_forward.4} parent=0 // loop_header_branch
    %15 = sbr.rel (%p13) target = $region8
  $region5: #{preact_unit_forward.4} parent=0 // loop_body
    %s17 = ssub.s32 %s12, 1
    %s18 = ssub.s32 %s12, 2
    %s19 = sadd.s32 %s12, 1
    %s20 = ssub.s32 %s12, %s19
    %p21 = scmp.eq.s32.totalorder %s20, 0
    %s23 = sadd.s32 %s22, 1
    %s24 = scalar_select %p21, %s22, %s23
    %p27 = pneg %p21
    %p28 = scmp.eq.s32.totalorder %s12, 1
    %p29 = por %p27, %p28
    %p30 = scmp.ne.s32.totalorder %s22, %s25
    %p31 = scmp.eq.s32.totalorder %s12, 0
    %p32 = por %p30, %p31
    %p33 = scmp.ne.s32.totalorder %s22, %s25
    %p34 = scmp.eq.s32.totalorder %s17, 1
    %p35 = por %p33, %p34
    %p36 = scmp.ne.s32.totalorder %s25, %s26
    %p37 = scmp.eq.s32.totalorder %s17, 0
    %p38 = por %p36, %p37
    %p39 = scmp.ne.s32.totalorder %s25, %s26
    %p40 = scmp.eq.s32.totalorder %s18, 1
    %p41 = por %p39, %p40
    %p43 = scmp.ne.s32.totalorder %s26, %s42
    %p44 = scmp.eq.s32.totalorder %s18, 0
    %p45 = por %p43, %p44
    %s47 = sadd.s32 %s46, 1
    %p50 = scmp.eq.s32.totalorder %s12, 1
    %p51 = scmp.ne.s32.totalorder %s46, %s48
    %p52 = scmp.eq.s32.totalorder %s12, 0
    %p53 = por %p51, %p52
    %p54 = scmp.ne.s32.totalorder %s46, %s48
    %p55 = scmp.eq.s32.totalorder %s17, 1
    %p56 = por %p54, %p55
    %p57 = scmp.ne.s32.totalorder %s48, %s49
    %p58 = scmp.eq.s32.totalorder %s17, 0
    %p59 = por %p57, %p58
    %p60 = scmp.ne.s32.totalorder %s48, %s49
    %p61 = scmp.eq.s32.totalorder %s18, 1
    %p62 = por %p60, %p61
    %p64 = scmp.ne.s32.totalorder %s49, %s63
    %p65 = scmp.eq.s32.totalorder %s18, 0
    %p66 = por %p64, %p65
    %s68 = sadd.s32 %s67, 1
    %p71 = scmp.eq.s32.totalorder %s12, 1
    %p72 = scmp.ne.s32.totalorder %s67, %s69
    %p73 = scmp.eq.s32.totalorder %s12, 0
    %p74 = por %p72, %p73
    %p75 = scmp.ne.s32.totalorder %s67, %s69
    %p76 = scmp.eq.s32.totalorder %s17, 1
    %p77 = por %p75, %p76
    %p78 = scmp.ne.s32.totalorder %s69, %s70
    %p79 = scmp.eq.s32.totalorder %s17, 0
    %p80 = por %p78, %p79
    %p81 = scmp.ne.s32.totalorder %s69, %s70
    %p82 = scmp.eq.s32.totalorder %s18, 1
    %p83 = por %p81, %p82
    %p85 = scmp.ne.s32.totalorder %s70, %s84
    %p86 = scmp.eq.s32.totalorder %s18, 0
    %p87 = por %p85, %p86
    %s89 = sadd.s32 %s88, 1
    %p92 = scmp.eq.s32.totalorder %s12, 1
    %p93 = scmp.ne.s32.totalorder %s88, %s90
    %p94 = scmp.eq.s32.totalorder %s12, 0
    %p95 = por %p93, %p94
    %p96 = scmp.ne.s32.totalorder %s88, %s90
    %p97 = scmp.eq.s32.totalorder %s17, 1
    %p98 = por %p96, %p97
    %p99 = scmp.ne.s32.totalorder %s90, %s91
    %p100 = scmp.eq.s32.totalorder %s17, 0
    %p101 = por %p99, %p100
    %p102 = scmp.ne.s32.totalorder %s90, %s91
    %p103 = scmp.eq.s32.totalorder %s18, 1
    %p104 = por %p102, %p103
    %p106 = scmp.ne.s32.totalorder %s91, %s105
    %p107 = scmp.eq.s32.totalorder %s18, 0
    %p108 = por %p106, %p107
    %s110 = sadd.s32 %s109, 1
    %p113 = scmp.eq.s32.totalorder %s12, 1
    %p114 = scmp.ne.s32.totalorder %s109, %s111
    %p115 = scmp.eq.s32.totalorder %s12, 0
    %p116 = por %p114, %p115
    %p117 = scmp.ne.s32.totalorder %s109, %s111
    %p118 = scmp.eq.s32.totalorder %s17, 1
    %p119 = por %p117, %p118
    %p120 = scmp.ne.s32.totalorder %s111, %s112
    %p121 = scmp.eq.s32.totalorder %s17, 0
    %p122 = por %p120, %p121
    %p123 = scmp.ne.s32.totalorder %s111, %s112
    %p124 = scmp.eq.s32.totalorder %s18, 1
    %p125 = por %p123, %p124
    %p127 = scmp.ne.s32.totalorder %s112, %s126
    %p128 = scmp.eq.s32.totalorder %s18, 0
    %p129 = por %p127, %p128
    %s131 = sadd.s32 %s130, 1
    %p134 = scmp.eq.s32.totalorder %s12, 1
    %p135 = scmp.ne.s32.totalorder %s130, %s132
    %p136 = scmp.eq.s32.totalorder %s12, 0
    %p137 = por %p135, %p136
    %p138 = scmp.ne.s32.totalorder %s130, %s132
    %p139 = scmp.eq.s32.totalorder %s17, 1
    %p140 = por %p138, %p139
    %p141 = scmp.ne.s32.totalorder %s132, %s133
    %p142 = scmp.eq.s32.totalorder %s17, 0
    %p143 = por %p141, %p142
    %p144 = scmp.ne.s32.totalorder %s132, %s133
    %p145 = scmp.eq.s32.totalorder %s18, 1
    %p146 = por %p144, %p145
    %p148 = scmp.ne.s32.totalorder %s133, %s147
    %p149 = scmp.eq.s32.totalorder %s18, 0
    %p150 = por %p148, %p149
    %s151 = ssub.s32 %s12, %s19
    %p152 = scmp.eq.s32.totalorder %s151, 0
    %s154 = sadd.s32 %s153, 1
    %s155 = scalar_select %p152, %s153, %s154
    %p158 = pneg %p152
    %p159 = scmp.eq.s32.totalorder %s12, 1
    %p160 = por %p158, %p159
    %p161 = scmp.ne.s32.totalorder %s153, %s156
    %p162 = scmp.eq.s32.totalorder %s12, 0
    %p163 = por %p161, %p162
    %p164 = scmp.ne.s32.totalorder %s153, %s156
    %p165 = scmp.eq.s32.totalorder %s17, 1
    %p166 = por %p164, %p165
    %p167 = scmp.ne.s32.totalorder %s156, %s157
    %p168 = scmp.eq.s32.totalorder %s17, 0
    %p169 = por %p167, %p168
    %p170 = scmp.ne.s32.totalorder %s156, %s157
    %p171 = scmp.eq.s32.totalorder %s18, 1
    %p172 = por %p170, %p171
    %p174 = scmp.ne.s32.totalorder %s157, %s173
    %p175 = scmp.eq.s32.totalorder %s18, 0
    %p176 = por %p174, %p175
    %p177 = scmp.le.s32.totalorder 1, %s12
    %p178 = scmp.lt.s32.totalorder %s12, 3
    %p179 = pnand %p177, %p178
    %p180 = pneg %p179
    // Predicated region
    $region9: #{preact_unit_forward.4} parent=5 // pred_check
      _
    $region10: #{preact_unit_forward.4} parent=5 // pred_check_branch
      %182 = sbr.rel (%p179) target = $region12
    $region11: #{preact_unit_forward.4} parent=5 // pred_region
      %s183 = ssub.s32 %s12, 1
      // Predicated region
      $region13: #{preact_unit_forward.4} parent=11 // pred_check
        %p184 = pneg %p59
      $region14: #{preact_unit_forward.4} parent=11 // pred_check_branch
        %186 = sbr.rel (%p184) target = $region16
      $region15: #{preact_unit_forward.4} parent=11 // pred_region
        _
      $region16: #{preact_unit_forward.4} parent=11 // pred_fallthru
        _
      // Predicated region
      $region17: #{preact_unit_forward.4} parent=11 // pred_check
        %p187 = pneg %p80
      $region18: #{preact_unit_forward.4} parent=11 // pred_check_branch
        %189 = sbr.rel (%p187) target = $region20
      $region19: #{preact_unit_forward.4} parent=11 // pred_region
        _
      $region20: #{preact_unit_forward.4} parent=11 // pred_fallthru
        _
      // Predicated region
      $region21: #{preact_unit_forward.4} parent=11 // pred_check
        %p190 = pneg %p101
      $region22: #{preact_unit_forward.4} parent=11 // pred_check_branch
        %192 = sbr.rel (%p190) target = $region24
      $region23: #{preact_unit_forward.4} parent=11 // pred_region
        _
      $region24: #{preact_unit_forward.4} parent=11 // pred_fallthru
        _
      // Predicated region
      $region25: #{preact_unit_forward.4} parent=11 // pred_check
        %p193 = pneg %p122
      $region26: #{preact_unit_forward.4} parent=11 // pred_check_branch
        %195 = sbr.rel (%p193) target = $region28
      $region27: #{preact_unit_forward.4} parent=11 // pred_region
        _
      $region28: #{preact_unit_forward.4} parent=11 // pred_fallthru
        _
      // Predicated region
      $region29: #{preact_unit_forward.4} parent=11 // pred_check
        %p196 = pneg %p143
      $region30: #{preact_unit_forward.4} parent=11 // pred_check_branch
        %198 = sbr.rel (%p196) target = $region32
      $region31: #{preact_unit_forward.4} parent=11 // pred_region
        _
      $region32: #{preact_unit_forward.4} parent=11 // pred_fallthru
        _
    $region12: #{preact_unit_forward.4} parent=5 // pred_fallthru
      _
    %p199 = scmp.lt.s32.totalorder %s12, 2
    // Predicated region
    $region33: #{preact_unit_forward.4} parent=5 // pred_check
      %p200 = pneg %p199
    $region34: #{preact_unit_forward.4} parent=5 // pred_check_branch
      %202 = sbr.rel (%p200) target = $region36
    $region35: #{preact_unit_forward.4} parent=5 // pred_region
      // Predicated region
      $region37: #{preact_unit_forward.4} parent=35 // pred_check
        %p203 = pneg %p32
      $region38: #{preact_unit_forward.4} parent=35 // pred_check_branch
        %205 = sbr.rel (%p203) target = $region40
      $region39: #{preact_unit_forward.4} parent=35 // pred_region
        %p206 = scmp.lt.s32.totalorder %s12, 1
        %s207 = scalar_select %p206, %s12, 1
        %s208 = smul.addr %s207, 18
        %s209 = smul.addr %s208, 8
        %s210 = scalar_lea.vmem %s0, %s209
      $region40: #{preact_unit_forward.4} parent=35 // pred_fallthru
        _
    $region36: #{preact_unit_forward.4} parent=5 // pred_fallthru
      _
    %p211 = scmp.le.s32.totalorder 1, %s12
    %p212 = scmp.lt.s32.totalorder %s12, 3
    %p213 = pnand %p211, %p212
    %p214 = pneg %p213
    // Predicated region
    $region41: #{preact_unit_forward.4} parent=5 // pred_check
      _
    $region42: #{preact_unit_forward.4} parent=5 // pred_check_branch
      %216 = sbr.rel (%p213) target = $region44
    $region43: #{preact_unit_forward.4} parent=5 // pred_region
      %s217 = ssub.s32 %s12, 1
      %p218 = scmp.lt.s32.totalorder %s17, 1
      %s219 = scalar_select %p218, %s17, 1
      %s220 = smul.addr %s219, 18
      %s221 = smul.addr %s220, 8
      %s222 = scalar_lea.vmem %s0, %s221
      %p223 = pneg %p38
      %p224 = pneg %p35
      %p225 = pneg %p59
      %p226 = pneg %p56
      %p227 = pneg %p80
      %p228 = pneg %p77
      %p229 = pneg %p101
      %p230 = pneg %p98
      %p231 = pneg %p122
      %p232 = pneg %p119
      %p233 = pneg %p143
      %p234 = pneg %p140
      %p235 = pneg %p169
      %p236 = pneg %p166
      %p237 = scmp.lt.s32.totalorder %s17, 1
      %s238 = scalar_select %p237, %s17, 1
      %s239 = smul.addr %s238, 8
      %s240 = smul.addr %s239, 8
      %s241 = scalar_lea.vmem %s6, %s240
      %p242 = scmp.lt.s32.totalorder %s17, 1
      %s243 = scalar_select %p242, %s17, 1
      %s244 = smul.addr %s243, 18
      %s245 = smul.addr %s244, 8
      %s246 = scalar_lea.vmem %s0, %s245
      %p247 = scmp.lt.s32.totalorder %s17, 1
      %s248 = scalar_select %p247, %s17, 1
      %s249 = smul.addr %s248, 8
      %s250 = smul.addr %s249, 8
      %s251 = scalar_lea.vmem %s6, %s250
      %v253 = vld [vmem:[%s246] sm:$0xff]
      %v254 = vld [vmem:[%s246 + $0x8] sm:$0x1]
      %v255 = vld [vmem:[%s246 + $0x10] sm:$0xff]
      %v256 = vld [vmem:[%s246 + $0x18] sm:$0x1]
      %v257 = vld [vmem:[%s246 + $0x20] sm:$0xff]
      %v258 = vld [vmem:[%s246 + $0x28] sm:$0x1]
      %v259 = vld [vmem:[%s246 + $0x30] sm:$0xff]
      %v260 = vld [vmem:[%s246 + $0x38] sm:$0x1]
      %v261 = vld [vmem:[%s246 + $0x40] sm:$0xff]
      %v262 = vld [vmem:[%s246 + $0x48] sm:$0x1]
      %v263 = vld [vmem:[%s246 + $0x50] sm:$0xff]
      %v264 = vld [vmem:[%s246 + $0x58] sm:$0x1]
      %v265 = vld [vmem:[%s246 + $0x60] sm:$0xff]
      %v266 = vld [vmem:[%s246 + $0x68] sm:$0x1]
      %v267 = vld [vmem:[%s246 + $0x70] sm:$0xff]
      %v268 = vld [vmem:[%s246 + $0x78] sm:$0x1]
      %v269 = vld [vmem:[%s246 + $0x80] sm:$0xff]
      %v270 = vld [vmem:[%s246 + $0x88] sm:$0x1]
      %v271 = vld [vmem:[%s1] sm:$0x1]
      %v273 = vlaneseq
      %v274 = vshrl.u32 %v273, 7
      %v275 = vsub.s32 0, %v274
      %v276 = vrot.slane %v271, %v275
      %v278 = vmul.f32 %v253, %v276
      %v279 = vmul.f32 %v254, %v276
      %v280 = vmul.f32 %v255, %v276
      %v281 = vmul.f32 %v256, %v276
      %v282 = vmul.f32 %v257, %v276
      %v283 = vmul.f32 %v258, %v276
      %v284 = vmul.f32 %v259, %v276
      %v285 = vmul.f32 %v260, %v276
      %v286 = vmul.f32 %v261, %v276
      %v287 = vmul.f32 %v262, %v276
      %v288 = vmul.f32 %v263, %v276
      %v289 = vmul.f32 %v264, %v276
      %v290 = vmul.f32 %v265, %v276
      %v291 = vmul.f32 %v266, %v276
      %v292 = vmul.f32 %v267, %v276
      %v293 = vmul.f32 %v268, %v276
      %v294 = vmul.f32 %v269, %v276
      %v295 = vmul.f32 %v270, %v276
      %v296 = vld [vmem:[%s2] sm:$0x1]
      %v298 = vlaneseq
      %v299 = vshrl.u32 %v298, 7
      %v300 = vsub.s32 0, %v299
      %v301 = vrot.slane %v296, %v300
      %v303 = vadd.f32 %v278, %v301
      %v304 = vadd.f32 %v279, %v301
      %v305 = vadd.f32 %v280, %v301
      %v306 = vadd.f32 %v281, %v301
      %v307 = vadd.f32 %v282, %v301
      %v308 = vadd.f32 %v283, %v301
      %v309 = vadd.f32 %v284, %v301
      %v310 = vadd.f32 %v285, %v301
      %v311 = vadd.f32 %v286, %v301
      %v312 = vadd.f32 %v287, %v301
      %v313 = vadd.f32 %v288, %v301
      %v314 = vadd.f32 %v289, %v301
      %v315 = vadd.f32 %v290, %v301
      %v316 = vadd.f32 %v291, %v301
      %v317 = vadd.f32 %v292, %v301
      %v318 = vadd.f32 %v293, %v301
      %v319 = vadd.f32 %v294, %v301
      %v320 = vadd.f32 %v295, %v301
      %v321 = vmax.f32 %v303, 0.0
      %v322 = vmax.f32 %v304, 0.0
      %v323 = vmax.f32 %v305, 0.0
      %v324 = vmax.f32 %v306, 0.0
      %v325 = vmax.f32 %v307, 0.0
      %v326 = vmax.f32 %v308, 0.0
      %v327 = vmax.f32 %v309, 0.0
      %v328 = vmax.f32 %v310, 0.0
      %v329 = vmax.f32 %v311, 0.0
      %v330 = vmax.f32 %v312, 0.0
      %v331 = vmax.f32 %v313, 0.0
      %v332 = vmax.f32 %v314, 0.0
      %v333 = vmax.f32 %v315, 0.0
      %v334 = vmax.f32 %v316, 0.0
      %v335 = vmax.f32 %v317, 0.0
      %v336 = vmax.f32 %v318, 0.0
      %v337 = vmax.f32 %v319, 0.0
      %v338 = vmax.f32 %v320, 0.0
      %v339 = vld [vmem:[%s4] sm:$0x1]
      %v340 = vld [vmem:[%s4 + $0x1] sm:$0x1]
      %v341 = vld [vmem:[%s4 + $0x2] sm:$0x1]
      %v342 = vld [vmem:[%s4 + $0x3] sm:$0x1]
      %v343 = vld [vmem:[%s4 + $0x4] sm:$0x1]
      %v344 = vld [vmem:[%s4 + $0x5] sm:$0x1]
      %v345 = vld [vmem:[%s4 + $0x6] sm:$0x1]
      %v346 = vld [vmem:[%s4 + $0x7] sm:$0x1]
      %v347 = vld [vmem:[%s4 + $0x8] sm:$0x1]
      %v357 = vlaneseq
      %v358 = vshrl.u32 %v357, 7
      %v359 = vsub.s32 0, %v358
      %v360 = vrot.slane %v339, %v359
      %v361 = vlaneseq
      %v362 = vshrl.u32 %v361, 7
      %v363 = vsub.s32 0, %v362
      %v364 = vrot.slane %v340, %v363
      %v365 = vlaneseq
      %v366 = vshrl.u32 %v365, 7
      %v367 = vsub.s32 0, %v366
      %v368 = vrot.slane %v341, %v367
      %v369 = vlaneseq
      %v370 = vshrl.u32 %v369, 7
      %v371 = vsub.s32 0, %v370
      %v372 = vrot.slane %v342, %v371
      %v373 = vlaneseq
      %v374 = vshrl.u32 %v373, 7
      %v375 = vsub.s32 0, %v374
      %v376 = vrot.slane %v343, %v375
      %v377 = vlaneseq
      %v378 = vshrl.u32 %v377, 7
      %v379 = vsub.s32 0, %v378
      %v380 = vrot.slane %v344, %v379
      %v381 = vlaneseq
      %v382 = vshrl.u32 %v381, 7
      %v383 = vsub.s32 0, %v382
      %v384 = vrot.slane %v345, %v383
      %v385 = vlaneseq
      %v386 = vshrl.u32 %v385, 7
      %v387 = vsub.s32 0, %v386
      %v388 = vrot.slane %v346, %v387
      %v389 = vlaneseq
      %v390 = vshrl.u32 %v389, 7
      %v391 = vsub.s32 0, %v390
      %v392 = vrot.slane %v347, %v391
      %v402 = vmul.f32 %v321, %v360
      %v403 = vmul.f32 %v322, %v360
      %v404 = vmul.f32 %v323, %v364
      %v405 = vmul.f32 %v324, %v364
      %v406 = vmul.f32 %v325, %v368
      %v407 = vmul.f32 %v326, %v368
      %v408 = vmul.f32 %v327, %v372
      %v409 = vmul.f32 %v328, %v372
      %v410 = vmul.f32 %v329, %v376
      %v411 = vmul.f32 %v330, %v376
      %v412 = vmul.f32 %v331, %v380
      %v413 = vmul.f32 %v332, %v380
      %v414 = vmul.f32 %v333, %v384
      %v415 = vmul.f32 %v334, %v384
      %v416 = vmul.f32 %v335, %v388
      %v417 = vmul.f32 %v336, %v388
      %v418 = vmul.f32 %v337, %v392
      %v419 = vmul.f32 %v338, %v392
      %v420 = vld [vmem:[%s5] sm:$0xff]
      %v421 = vld [vmem:[%s5 + $0x8] sm:$0x1]
      %v422 = vmul.f32 %v402, %v420
      %v423 = vmul.f32 %v403, %v421
      %v424 = vmul.f32 %v404, %v420
      %v425 = vmul.f32 %v405, %v421
      %v426 = vmul.f32 %v406, %v420
      %v427 = vmul.f32 %v407, %v421
      %v428 = vmul.f32 %v408, %v420
      %v429 = vmul.f32 %v409, %v421
      %v430 = vmul.f32 %v410, %v420
      %v431 = vmul.f32 %v411, %v421
      %v432 = vmul.f32 %v412, %v420
      %v433 = vmul.f32 %v413, %v421
      %v434 = vmul.f32 %v414, %v420
      %v435 = vmul.f32 %v415, %v421
      %v436 = vmul.f32 %v416, %v420
      %v437 = vmul.f32 %v417, %v421
      %v438 = vmul.f32 %v418, %v420
      %v439 = vmul.f32 %v419, %v421
      %v440 = vpack.c.bf16 %v423, %v422
      %v441 = vpack.c.bf16 %v425, %v424
      %v442 = vpack.c.bf16 %v427, %v426
      %v443 = vpack.c.bf16 %v429, %v428
      %v444 = vpack.c.bf16 %v431, %v430
      %v445 = vpack.c.bf16 %v433, %v432
      %v446 = vpack.c.bf16 %v435, %v434
      %v447 = vpack.c.bf16 %v437, %v436
      %v448 = vpack.c.bf16 %v439, %v438
      %v450 = vshrl.u32 %v440, 16
      %v452 = vshll.u32 %v440, 16
      %v454 = vrot.slane %v452, 1
      %v455 = vor.u32 %v450, %v454
      %v457 = vshrl.u32 %v441, 16
      %v459 = vshll.u32 %v441, 16
      %v461 = vrot.slane %v459, 1
      %v462 = vor.u32 %v457, %v461
      %v464 = vshrl.u32 %v442, 16
      %v466 = vshll.u32 %v442, 16
      %v468 = vrot.slane %v466, 1
      %v469 = vor.u32 %v464, %v468
      %v471 = vshrl.u32 %v443, 16
      %v473 = vshll.u32 %v443, 16
      %v475 = vrot.slane %v473, 1
      %v476 = vor.u32 %v471, %v475
      %v478 = vshrl.u32 %v444, 16
      %v480 = vshll.u32 %v444, 16
      %v482 = vrot.slane %v480, 1
      %v483 = vor.u32 %v478, %v482
      %v485 = vshrl.u32 %v445, 16
      %v487 = vshll.u32 %v445, 16
      %v489 = vrot.slane %v487, 1
      %v490 = vor.u32 %v485, %v489
      %v492 = vshrl.u32 %v446, 16
      %v494 = vshll.u32 %v446, 16
      %v496 = vrot.slane %v494, 1
      %v497 = vor.u32 %v492, %v496
      %v499 = vshrl.u32 %v447, 16
      %v501 = vshll.u32 %v447, 16
      %v503 = vrot.slane %v501, 1
      %v504 = vor.u32 %v499, %v503
      %v506 = vshrl.u32 %v448, 16
      %v508 = vshll.u32 %v448, 16
      %v510 = vrot.slane %v508, 1
      %v511 = vor.u32 %v506, %v510
      %512 = vrot.lane.b32.xlu0 %v455, 16
      %v513 = vpop.permute.xlu0 %512
      %514 = vrot.lane.b32.xlu0 %v462, 16
      %v515 = vpop.permute.xlu0 %514
      %516 = vrot.lane.b32.xlu0 %v469, 16
      %v517 = vpop.permute.xlu0 %516
      %518 = vrot.lane.b32.xlu0 %v476, 16
      %v519 = vpop.permute.xlu0 %518
      %520 = vrot.lane.b32.xlu0 %v483, 16
      %v521 = vpop.permute.xlu0 %520
      %522 = vrot.lane.b32.xlu0 %v490, 16
      %v523 = vpop.permute.xlu0 %522
      %524 = vrot.lane.b32.xlu0 %v497, 16
      %v525 = vpop.permute.xlu0 %524
      %526 = vrot.lane.b32.xlu0 %v504, 16
      %v527 = vpop.permute.xlu0 %526
      %528 = vrot.lane.b32.xlu0 %v511, 16
      %v529 = vpop.permute.xlu0 %528
      %vm530 = vcmask 130048
      %v532 = vsel %vm530, %v440, %v513
      %v534 = vsel %vm530, %v441, %v515
      %v536 = vsel %vm530, %v442, %v517
      %v538 = vsel %vm530, %v443, %v519
      %v540 = vsel %vm530, %v444, %v521
      %v542 = vsel %vm530, %v445, %v523
      %v544 = vsel %vm530, %v446, %v525
      %v546 = vsel %vm530, %v447, %v527
      %v548 = vsel %vm530, %v448, %v529
      %v549 = vld [vmem:[%s3] sm:$0xf]
      %v550 = vld [vmem:[%s3 + $0x4] sm:$0xf]
      %v551 = vld [vmem:[%s3 + $0x8] sm:$0xf]
      %v552 = vld [vmem:[%s3 + $0xc] sm:$0xf]
      %s553 = scalar_lea.vmem %s3, 16
      %v554 = vld [vmem:[%s553] sm:$0xf]
      %v555 = vld [vmem:[%s553 + $0x4] sm:$0xf]
      %v556 = vld [vmem:[%s553 + $0x8] sm:$0xf]
      %v557 = vld [vmem:[%s553 + $0xc] sm:$0xf]
      %v566 = vunpack.c.l.b16 %v534
      %v567 = vunpack.c.l.b16 %v536
      %v568 = vunpack.c.l.b16 %v538
      %v569 = vunpack.c.l.b16 %v540
      %v570 = vunpack.c.l.b16 %v542
      %v571 = vunpack.c.l.b16 %v544
      %v572 = vunpack.c.l.b16 %v546
      %v573 = vunpack.c.l.b16 %v548
      %v574 = vpack.c.b16 %v567, %v566
      %v575 = vpack.c.b16 %v569, %v568
      %v576 = vpack.c.b16 %v571, %v570
      %v577 = vpack.c.b16 %v573, %v572
      %v582 = vunpack.c.l.b16 %v554
      %v583 = vunpack.c.l.b16 %v555
      %v584 = vunpack.c.l.b16 %v556
      %v585 = vunpack.c.l.b16 %v557
      %v586 = vpack.c.b16 %v583, %v582
      %v587 = vpack.c.b16 %v585, %v584
      %vm590 = vcmask 261120
      %v592 = vsel %vm590, %v574, 0
      %v595 = vsel %vm590, %v575, 0
      %v598 = vsel %vm590, %v576, 0
      %v601 = vsel %vm590, %v577, 0
      %603 = vmatprep.subr.bf16.mxu0 0
      %604 = vmatpush1.bf16.msra.mxu0 %v586
      %605 = vmatprep.subr.bf16.mxu0 0
      %606 = vmatpush1.bf16.msra.mxu0 %v587
      %607 = vmatprep.subr.bf16.mxu0 0
      %608 = vmatpush1.bf16.msra.mxu0 0
      %609 = vmatprep.subr.bf16.mxu0 0
      %610 = vmatpush1.bf16.msra.mxu0 0
      %611 = vmatprep.subr.bf16.mxu0 0
      %612 = vmatpush1.bf16.msra.mxu0 0
      %613 = vmatprep.subr.bf16.mxu0 0
      %614 = vmatpush1.bf16.msra.mxu0 0
      %615 = vmatprep.subr.bf16.mxu0 0
      %616 = vmatpush1.bf16.msra.mxu0 0
      %617 = vmatprep.subr.bf16.mxu0 0
      %618 = vmatpush1.bf16.msra.mxu0 0
      %619 = vmatprep.subr.bf16.mxu0 0
      %620 = vmatpush1.bf16.msra.mxu0 0
      %621 = vmatprep.subr.bf16.mxu0 0
      %622 = vmatpush1.bf16.msra.mxu0 0
      %623 = vmatprep.subr.bf16.mxu0 0
      %624 = vmatpush1.bf16.msra.mxu0 0
      %625 = vmatprep.subr.bf16.mxu0 0
      %626 = vmatpush1.bf16.msra.mxu0 0
      %627 = vmatprep.subr.bf16.mxu0 0
      %628 = vmatpush1.bf16.msra.mxu0 0
      %629 = vmatprep.subr.bf16.mxu0 0
      %630 = vmatpush1.bf16.msra.mxu0 0
      %631 = vmatprep.subr.bf16.mxu0 0
      %632 = vmatpush1.bf16.msra.mxu0 0
      %633 = vmatprep.subr.bf16.mxu0 0
      %634 = vmatpush1.bf16.msra.mxu0 0
      %635 = vmatprep.mubr.bf16.mxu0 0
      %636 = vmatmul.mubr.bf16.gmra.mrb[0].mxu0 %v592
      %v637 = vpop.f32.mrb[0].mxu0
      %v638 = vadd.f32 0.0, %v637
      %v639 = vpop.f32.mrb[0].mxu0
      %v640 = vpop.f32.mrb[0].mxu0
      %v641 = vadd.f32 0.0, %v640
      %v642 = vpop.f32.mrb[0].mxu0
      %643 = vmatprep.mubr.bf16.mxu0 0
      %644 = vmatmul.mubr.bf16.gmra.mrb[0].mxu0 %v595
      %v645 = vpop.f32.mrb[0].mxu0
      %v646 = vadd.f32 0.0, %v645
      %v647 = vpop.f32.mrb[0].mxu0
      %v648 = vpop.f32.mrb[0].mxu0
      %v649 = vadd.f32 0.0, %v648
      %v650 = vpop.f32.mrb[0].mxu0
      %651 = vmatprep.mubr.bf16.mxu0 0
      %652 = vmatmul.mubr.bf16.gmra.mrb[0].mxu0 %v598
      %v653 = vpop.f32.mrb[0].mxu0
      %v654 = vadd.f32 0.0, %v653
      %v655 = vpop.f32.mrb[0].mxu0
      %v656 = vpop.f32.mrb[0].mxu0
      %v657 = vadd.f32 0.0, %v656
      %v658 = vpop.f32.mrb[0].mxu0
      %659 = vmatprep.mubr.bf16.mxu0 0
      %660 = vmatmul.mubr.bf16.gmra.mrb[0].mxu0 %v601
      %v661 = vpop.f32.mrb[0].mxu0
      %v662 = vadd.f32 0.0, %v661
      %v663 = vpop.f32.mrb[0].mxu0
      %v664 = vpop.f32.mrb[0].mxu0
      %v665 = vadd.f32 0.0, %v664
      %v666 = vpop.f32.mrb[0].mxu0
      %667 = vdwg.mxu0
      %v669 = vunpack.c.l.b16 %v532
      %v670 = vpack.c.b16 %v566, %v669
      %v671 = vpack.c.b16 %v568, %v567
      %v672 = vpack.c.b16 %v570, %v569
      %v673 = vpack.c.b16 %v572, %v571
      %v678 = vunpack.c.l.b16 %v549
      %v679 = vunpack.c.l.b16 %v550
      %v680 = vunpack.c.l.b16 %v551
      %v681 = vunpack.c.l.b16 %v552
      %v682 = vpack.c.b16 %v679, %v678
      %v683 = vpack.c.b16 %v681, %v680
      %v687 = vsel %vm590, %v670, 0
      %v690 = vsel %vm590, %v671, 0
      %v693 = vsel %vm590, %v672, 0
      %v696 = vsel %vm590, %v673, 0
      %698 = vmatprep.subr.bf16.mxu0 0
      %699 = vmatpush1.bf16.msra.mxu0 %v682
      %700 = vmatprep.subr.bf16.mxu0 0
      %701 = vmatpush1.bf16.msra.mxu0 %v683
      %702 = vmatprep.subr.bf16.mxu0 0
      %703 = vmatpush1.bf16.msra.mxu0 0
      %704 = vmatprep.subr.bf16.mxu0 0
      %705 = vmatpush1.bf16.msra.mxu0 0
      %706 = vmatprep.subr.bf16.mxu0 0
      %707 = vmatpush1.bf16.msra.mxu0 0
      %708 = vmatprep.subr.bf16.mxu0 0
      %709 = vmatpush1.bf16.msra.mxu0 0
      %710 = vmatprep.subr.bf16.mxu0 0
      %711 = vmatpush1.bf16.msra.mxu0 0
      %712 = vmatprep.subr.bf16.mxu0 0
      %713 = vmatpush1.bf16.msra.mxu0 0
      %714 = vmatprep.subr.bf16.mxu0 0
      %715 = vmatpush1.bf16.msra.mxu0 0
      %716 = vmatprep.subr.bf16.mxu0 0
      %717 = vmatpush1.bf16.msra.mxu0 0
      %718 = vmatprep.subr.bf16.mxu0 0
      %719 = vmatpush1.bf16.msra.mxu0 0
      %720 = vmatprep.subr.bf16.mxu0 0
      %721 = vmatpush1.bf16.msra.mxu0 0
      %722 = vmatprep.subr.bf16.mxu0 0
      %723 = vmatpush1.bf16.msra.mxu0 0
      %724 = vmatprep.subr.bf16.mxu0 0
      %725 = vmatpush1.bf16.msra.mxu0 0
      %726 = vmatprep.subr.bf16.mxu0 0
      %727 = vmatpush1.bf16.msra.mxu0 0
      %728 = vmatprep.subr.bf16.mxu0 0
      %729 = vmatpush1.bf16.msra.mxu0 0
      %730 = vmatprep.mubr.bf16.mxu0 0
      %731 = vmatmul.mubr.bf16.gmra.mrb[0].mxu0 %v687
      %v732 = vpop.f32.mrb[0].mxu0
      %v733 = vadd.f32 %v638, %v732
      %v734 = vpop.f32.mrb[0].mxu0
      %v735 = vpop.f32.mrb[0].mxu0
      %v736 = vadd.f32 %v641, %v735
      %v737 = vpop.f32.mrb[0].mxu0
      %738 = vmatprep.mubr.bf16.mxu0 0
      %739 = vmatmul.mubr.bf16.gmra.mrb[0].mxu0 %v690
      %v740 = vpop.f32.mrb[0].mxu0
      %v741 = vadd.f32 %v646, %v740
      %v742 = vpop.f32.mrb[0].mxu0
      %v743 = vpop.f32.mrb[0].mxu0
      %v744 = vadd.f32 %v649, %v743
      %v745 = vpop.f32.mrb[0].mxu0
      %746 = vmatprep.mubr.bf16.mxu0 0
      %747 = vmatmul.mubr.bf16.gmra.mrb[0].mxu0 %v693
      %v748 = vpop.f32.mrb[0].mxu0
      %v749 = vadd.f32 %v654, %v748
      %v750 = vpop.f32.mrb[0].mxu0
      %v751 = vpop.f32.mrb[0].mxu0
      %v752 = vadd.f32 %v657, %v751
      %v753 = vpop.f32.mrb[0].mxu0
      %754 = vmatprep.mubr.bf16.mxu0 0
      %755 = vmatmul.mubr.bf16.gmra.mrb[0].mxu0 %v696
      %v756 = vpop.f32.mrb[0].mxu0
      %v757 = vadd.f32 %v662, %v756
      %v758 = vpop.f32.mrb[0].mxu0
      %v759 = vpop.f32.mrb[0].mxu0
      %v760 = vadd.f32 %v665, %v759
      %v761 = vpop.f32.mrb[0].mxu0
      %762 = vdwg.mxu0
      %vm763 = vcmask 64512
      %764 = vst.msk [vmem:[%s251] sm:$0xff] %vm763, %v733
      %765 = vst.msk [vmem:[%s251 + $0x8] sm:$0xff] %vm763, %v736
      %766 = vst.msk [vmem:[%s251 + $0x10] sm:$0xff] %vm763, %v741
      %767 = vst.msk [vmem:[%s251 + $0x18] sm:$0xff] %vm763, %v744
      %768 = vst.msk [vmem:[%s251 + $0x20] sm:$0xff] %vm763, %v749
      %769 = vst.msk [vmem:[%s251 + $0x28] sm:$0xff] %vm763, %v752
      %770 = vst.msk [vmem:[%s251 + $0x30] sm:$0xff] %vm763, %v757
      %771 = vst.msk [vmem:[%s251 + $0x38] sm:$0xff] %vm763, %v760
      %p772 = scmp.lt.s32.totalorder %s17, 1
      %s773 = scalar_select %p772, %s17, 1
      %s774 = smul.addr %s773, 8
      %s775 = smul.addr %s774, 8
      %s776 = scalar_lea.vmem %s6, %s775
      // Predicated region
      $region45: #{preact_unit_forward.4} parent=43 // pred_check
        %p777 = pneg %p166
      $region46: #{preact_unit_forward.4} parent=43 // pred_check_branch
        %779 = sbr.rel (%p777) target = $region48
      $region47: #{preact_unit_forward.4} parent=43 // pred_region
        _
      $region48: #{preact_unit_forward.4} parent=43 // pred_fallthru
        _
    $region44: #{preact_unit_forward.4} parent=5 // pred_fallthru
      _
    %p780 = scmp.le.s32.totalorder 2, %s12
    // Predicated region
    $region49: #{preact_unit_forward.4} parent=5 // pred_check
      %p781 = pneg %p780
    $region50: #{preact_unit_forward.4} parent=5 // pred_check_branch
      %783 = sbr.rel (%p781) target = $region52
    $region51: #{preact_unit_forward.4} parent=5 // pred_region
      %s784 = ssub.s32 %s12, 2
      // Predicated region
      $region53: #{preact_unit_forward.4} parent=51 // pred_check
        %p785 = pneg %p172
      $region54: #{preact_unit_forward.4} parent=51 // pred_check_branch
        %787 = sbr.rel (%p785) target = $region56
      $region55: #{preact_unit_forward.4} parent=51 // pred_region
        %p788 = scmp.lt.s32.totalorder %s18, 1
        %s789 = scalar_select %p788, %s18, 1
        %s790 = smul.addr %s789, 8
        %s791 = smul.addr %s790, 8
        %s792 = scalar_lea.vmem %s6, %s791
      $region56: #{preact_unit_forward.4} parent=51 // pred_fallthru
        _
    $region52: #{preact_unit_forward.4} parent=5 // pred_fallthru
      _
  $region6: #{preact_unit_forward.4} parent=0 // loop_footer
    %s16 = sadd.s32 1, %s12
  $region7: #{preact_unit_forward.4} parent=0 // loop_footer_branch
    %11 = sbr.rel target = $region3
  $region8: #{preact_unit_forward.4} parent=0 // loop_exit
    _

// kernel: preact_unit_forward.5
$region0: #{preact_unit_forward.5}
  #allocation0 [shape = 'u32[]', space=smem, size = 0x4, offset = 0x4, fixed_abs, tag = 'smem constant byte address 0x4 - core index']
  #allocation1 [shape = 'u32[144,128]{1,0:T(1,128)}', space=vmem, size = 0x12000, scoped, tag = 'internal scratch']
  %s0 = inlined_call_operand.vmem [shape: f32[2,10,10,8], index: 0, kind: input, shape index: {}]
  %s1 = inlined_call_operand.vmem [shape: f32[1,1,8], index: 1, kind: input, shape index: {}]
  %s2 = inlined_call_operand.vmem [shape: f32[1,1,8], index: 2, kind: input, shape index: {}]
  %s3 = inlined_call_operand.vmem [shape: bf16[3,24,8], index: 3, kind: input, shape index: {}]
  %s4 = inlined_call_operand.vmem [shape: f32[10,1,8], index: 4, kind: input, shape index: {}]
  %s5 = inlined_call_operand.vmem [shape: f32[1,10,8], index: 5, kind: input, shape index: {}]
  %s6 = inlined_call_operand.vmem [shape: f32[2,8,8,8], index: 6, kind: input, shape index: {}]
  %s7 = inlined_call_operand.vmem [shape: f32[2,8,8,8], index: 7, kind: output, shape index: {}]
  %s8 = sld [smem:[#allocation0]]
  $region61: #{preact_unit_forward.5} parent=0
    _
  %s10 = ssub.s32 1, %s8
  %s11 = scalar_select 0, %s10, %s8
  loop: start=0, step=1, limit=4
  $region2: #{preact_unit_forward.5} parent=0 // loop_pre_header
    _
  $region3: #{preact_unit_forward.5} parent=0 // loop_header
    %s13 = sphi 0, %s17
    %p14 = scmp.ge.s32.totalorder %s13, 4
    %s23 = sphi 0, %s25
    %s26 = sphi 0, %s23
    %s27 = sphi 0, %s26
    %s43 = sphi 0, %s27
    %s47 = sphi 0, %s47
    %s49 = sphi 0, %s47
    %s50 = sphi 0, %s49
    %s64 = sphi 0, %s50
    %s68 = sphi 0, %s68
    %s70 = sphi 0, %s68
    %s71 = sphi 0, %s70
    %s85 = sphi 0, %s71
    %s89 = sphi 0, %s89
    %s91 = sphi 0, %s89
    %s92 = sphi 0, %s91
    %s106 = sphi 0, %s92
    %s110 = sphi 0, %s110
    %s112 = sphi 0, %s110
    %s113 = sphi 0, %s112
    %s127 = sphi 0, %s113
    %s131 = sphi 0, %s131
    %s133 = sphi 0, %s131
    %s134 = sphi 0, %s133
    %s148 = sphi 0, %s134
    %s154 = sphi 0, %s156
    %s157 = sphi 0, %s154
    %s158 = sphi 0, %s157
    %s174 = sphi 0, %s158
    %s180 = sphi 0, %s182
    %s183 = sphi 0, %s180
    %s184 = sphi 0, %s183
    %s200 = sphi 0, %s184
  $region4: #{preact_unit_forward.5} parent=0 // loop_header_branch
    %16 = sbr.rel (%p14) target = $region8
  $region5: #{preact_unit_forward.5} parent=0 // loop_body
    %s18 = ssub.s32 %s13, 1
    %s19 = ssub.s32 %s13, 2
    %s20 = sadd.s32 %s13, 1
    %s21 = ssub.s32 %s13, %s20
    %p22 = scmp.eq.s32.totalorder %s21, 0
    %s24 = sadd.s32 %s23, 1
    %s25 = scalar_select %p22, %s23, %s24
    %p28 = pneg %p22
    %p29 = scmp.eq.s32.totalorder %s13, 1
    %p30 = por %p28, %p29
    %p31 = scmp.ne.s32.totalorder %s23, %s26
    %p32 = scmp.eq.s32.totalorder %s13, 0
    %p33 = por %p31, %p32
    %p34 = scmp.ne.s32.totalorder %s23, %s26
    %p35 = scmp.eq.s32.totalorder %s18, 1
    %p36 = por %p34, %p35
    %p37 = scmp.ne.s32.totalorder %s26, %s27
    %p38 = scmp.eq.s32.totalorder %s18, 0
    %p39 = por %p37, %p38
    %p40 = scmp.ne.s32.totalorder %s26, %s27
    %p41 = scmp.eq.s32.totalorder %s19, 1
    %p42 = por %p40, %p41
    %p44 = scmp.ne.s32.totalorder %s27, %s43
    %p45 = scmp.eq.s32.totalorder %s19, 0
    %p46 = por %p44, %p45
    %s48 = sadd.s32 %s47, 1
    %p51 = scmp.eq.s32.totalorder %s13, 1
    %p52 = scmp.ne.s32.totalorder %s47, %s49
    %p53 = scmp.eq.s32.totalorder %s13, 0
    %p54 = por %p52, %p53
    %p55 = scmp.ne.s32.totalorder %s47, %s49
    %p56 = scmp.eq.s32.totalorder %s18, 1
    %p57 = por %p55, %p56
    %p58 = scmp.ne.s32.totalorder %s49, %s50
    %p59 = scmp.eq.s32.totalorder %s18, 0
    %p60 = por %p58, %p59
    %p61 = scmp.ne.s32.totalorder %s49, %s50
    %p62 = scmp.eq.s32.totalorder %s19, 1
    %p63 = por %p61, %p62
    %p65 = scmp.ne.s32.totalorder %s50, %s64
    %p66 = scmp.eq.s32.totalorder %s19, 0
    %p67 = por %p65, %p66
    %s69 = sadd.s32 %s68, 1
    %p72 = scmp.eq.s32.totalorder %s13, 1
    %p73 = scmp.ne.s32.totalorder %s68, %s70
    %p74 = scmp.eq.s32.totalorder %s13, 0
    %p75 = por %p73, %p74
    %p76 = scmp.ne.s32.totalorder %s68, %s70
    %p77 = scmp.eq.s32.totalorder %s18, 1
    %p78 = por %p76, %p77
    %p79 = scmp.ne.s32.totalorder %s70, %s71
    %p80 = scmp.eq.s32.totalorder %s18, 0
    %p81 = por %p79, %p80
    %p82 = scmp.ne.s32.totalorder %s70, %s71
    %p83 = scmp.eq.s32.totalorder %s19, 1
    %p84 = por %p82, %p83
    %p86 = scmp.ne.s32.totalorder %s71, %s85
    %p87 = scmp.eq.s32.totalorder %s19, 0
    %p88 = por %p86, %p87
    %s90 = sadd.s32 %s89, 1
    %p93 = scmp.eq.s32.totalorder %s13, 1
    %p94 = scmp.ne.s32.totalorder %s89, %s91
    %p95 = scmp.eq.s32.totalorder %s13, 0
    %p96 = por %p94, %p95
    %p97 = scmp.ne.s32.totalorder %s89, %s91
    %p98 = scmp.eq.s32.totalorder %s18, 1
    %p99 = por %p97, %p98
    %p100 = scmp.ne.s32.totalorder %s91, %s92
    %p101 = scmp.eq.s32.totalorder %s18, 0
    %p102 = por %p100, %p101
    %p103 = scmp.ne.s32.totalorder %s91, %s92
    %p104 = scmp.eq.s32.totalorder %s19, 1
    %p105 = por %p103, %p104
    %p107 = scmp.ne.s32.totalorder %s92, %s106
    %p108 = scmp.eq.s32.totalorder %s19, 0
    %p109 = por %p107, %p108
    %s111 = sadd.s32 %s110, 1
    %p114 = scmp.eq.s32.totalorder %s13, 1
    %p115 = scmp.ne.s32.totalorder %s110, %s112
    %p116 = scmp.eq.s32.totalorder %s13, 0
    %p117 = por %p115, %p116
    %p118 = scmp.ne.s32.totalorder %s110, %s112
    %p119 = scmp.eq.s32.totalorder %s18, 1
    %p120 = por %p118, %p119
    %p121 = scmp.ne.s32.totalorder %s112, %s113
    %p122 = scmp.eq.s32.totalorder %s18, 0
    %p123 = por %p121, %p122
    %p124 = scmp.ne.s32.totalorder %s112, %s113
    %p125 = scmp.eq.s32.totalorder %s19, 1
    %p126 = por %p124, %p125
    %p128 = scmp.ne.s32.totalorder %s113, %s127
    %p129 = scmp.eq.s32.totalorder %s19, 0
    %p130 = por %p128, %p129
    %s132 = sadd.s32 %s131, 1
    %p135 = scmp.eq.s32.totalorder %s13, 1
    %p136 = scmp.ne.s32.totalorder %s131, %s133
    %p137 = scmp.eq.s32.totalorder %s13, 0
    %p138 = por %p136, %p137
    %p139 = scmp.ne.s32.totalorder %s131, %s133
    %p140 = scmp.eq.s32.totalorder %s18, 1
    %p141 = por %p139, %p140
    %p142 = scmp.ne.s32.totalorder %s133, %s134
    %p143 = scmp.eq.s32.totalorder %s18, 0
    %p144 = por %p142, %p143
    %p145 = scmp.ne.s32.totalorder %s133, %s134
    %p146 = scmp.eq.s32.totalorder %s19, 1
    %p147 = por %p145, %p146
    %p149 = scmp.ne.s32.totalorder %s134, %s148
    %p150 = scmp.eq.s32.totalorder %s19, 0
    %p151 = por %p149, %p150
    %s152 = ssub.s32 %s13, %s20
    %p153 = scmp.eq.s32.totalorder %s152, 0
    %s155 = sadd.s32 %s154, 1
    %s156 = scalar_select %p153, %s154, %s155
    %p159 = pneg %p153
    %p160 = scmp.eq.s32.totalorder %s13, 1
    %p161 = por %p159, %p160
    %p162 = scmp.ne.s32.totalorder %s154, %s157
    %p163 = scmp.eq.s32.totalorder %s13, 0
    %p164 = por %p162, %p163
    %p165 = scmp.ne.s32.totalorder %s154, %s157
    %p166 = scmp.eq.s32.totalorder %s18, 1
    %p167 = por %p165, %p166
    %p168 = scmp.ne.s32.totalorder %s157, %s158
    %p169 = scmp.eq.s32.totalorder %s18, 0
    %p170 = por %p168, %p169
    %p171 = scmp.ne.s32.totalorder %s157, %s158
    %p172 = scmp.eq.s32.totalorder %s19, 1
    %p173 = por %p171, %p172
    %p175 = scmp.ne.s32.totalorder %s158, %s174
    %p176 = scmp.eq.s32.totalorder %s19, 0
    %p177 = por %p175, %p176
    %s178 = ssub.s32 %s13, %s20
    %p179 = scmp.eq.s32.totalorder %s178, 0
    %s181 = sadd.s32 %s180, 1
    %s182 = scalar_select %p179, %s180, %s181
    %p185 = pneg %p179
    %p186 = scmp.eq.s32.totalorder %s13, 1
    %p187 = por %p185, %p186
    %p188 = scmp.ne.s32.totalorder %s180, %s183
    %p189 = scmp.eq.s32.totalorder %s13, 0
    %p190 = por %p188, %p189
    %p191 = scmp.ne.s32.totalorder %s180, %s183
    %p192 = scmp.eq.s32.totalorder %s18, 1
    %p193 = por %p191, %p192
    %p194 = scmp.ne.s32.totalorder %s183, %s184
    %p195 = scmp.eq.s32.totalorder %s18, 0
    %p196 = por %p194, %p195
    %p197 = scmp.ne.s32.totalorder %s183, %s184
    %p198 = scmp.eq.s32.totalorder %s19, 1
    %p199 = por %p197, %p198
    %p201 = scmp.ne.s32.totalorder %s184, %s200
    %p202 = scmp.eq.s32.totalorder %s19, 0
    %p203 = por %p201, %p202
    %p204 = scmp.le.s32.totalorder 1, %s13
    %p205 = scmp.lt.s32.totalorder %s13, 3
    %p206 = pnand %p204, %p205
    %p207 = pneg %p206
    // Predicated region
    $region9: #{preact_unit_forward.5} parent=5 // pred_check
      _
    $region10: #{preact_unit_forward.5} parent=5 // pred_check_branch
      %209 = sbr.rel (%p206) target = $region12
    $region11: #{preact_unit_forward.5} parent=5 // pred_region
      %s210 = ssub.s32 %s13, 1
      // Predicated region
      $region13: #{preact_unit_forward.5} parent=11 // pred_check
        %p211 = pneg %p60
      $region14: #{preact_unit_forward.5} parent=11 // pred_check_branch
        %213 = sbr.rel (%p211) target = $region16
      $region15: #{preact_unit_forward.5} parent=11 // pred_region
        _
      $region16: #{preact_unit_forward.5} parent=11 // pred_fallthru
        _
      // Predicated region
      $region17: #{preact_unit_forward.5} parent=11 // pred_check
        %p214 = pneg %p81
      $region18: #{preact_unit_forward.5} parent=11 // pred_check_branch
        %216 = sbr.rel (%p214) target = $region20
      $region19: #{preact_unit_forward.5} parent=11 // pred_region
        _
      $region20: #{preact_unit_forward.5} parent=11 // pred_fallthru
        _
      // Predicated region
      $region21: #{preact_unit_forward.5} parent=11 // pred_check
        %p217 = pneg %p102
      $region22: #{preact_unit_forward.5} parent=11 // pred_check_branch
        %219 = sbr.rel (%p217) target = $region24
      $region23: #{preact_unit_forward.5} parent=11 // pred_region
        _
      $region24: #{preact_unit_forward.5} parent=11 // pred_fallthru
        _
      // Predicated region
      $region25: #{preact_unit_forward.5} parent=11 // pred_check
        %p220 = pneg %p123
      $region26: #{preact_unit_forward.5} parent=11 // pred_check_branch
        %222 = sbr.rel (%p220) target = $region28
      $region27: #{preact_unit_forward.5} parent=11 // pred_region
        _
      $region28: #{preact_unit_forward.5} parent=11 // pred_fallthru
        _
      // Predicated region
      $region29: #{preact_unit_forward.5} parent=11 // pred_check
        %p223 = pneg %p144
      $region30: #{preact_unit_forward.5} parent=11 // pred_check_branch
        %225 = sbr.rel (%p223) target = $region32
      $region31: #{preact_unit_forward.5} parent=11 // pred_region
        _
      $region32: #{preact_unit_forward.5} parent=11 // pred_fallthru
        _
    $region12: #{preact_unit_forward.5} parent=5 // pred_fallthru
      _
    %p226 = scmp.lt.s32.totalorder %s13, 2
    // Predicated region
    $region33: #{preact_unit_forward.5} parent=5 // pred_check
      %p227 = pneg %p226
    $region34: #{preact_unit_forward.5} parent=5 // pred_check_branch
      %229 = sbr.rel (%p227) target = $region36
    $region35: #{preact_unit_forward.5} parent=5 // pred_region
      // Predicated region
      $region37: #{preact_unit_forward.5} parent=35 // pred_check
        %p230 = pneg %p33
      $region38: #{preact_unit_forward.5} parent=35 // pred_check_branch
        %232 = sbr.rel (%p230) target = $region40
      $region39: #{preact_unit_forward.5} parent=35 // pred_region
        %p233 = scmp.lt.s32.totalorder %s13, 1
        %s234 = scalar_select %p233, %s13, 1
        %s235 = smul.addr %s234, 20
        %s236 = smul.addr %s235, 8
        %s237 = scalar_lea.vmem %s0, %s236
      $region40: #{preact_unit_forward.5} parent=35 // pred_fallthru
        _
      // Predicated region
      $region41: #{preact_unit_forward.5} parent=35 // pred_check
        %p238 = pneg %p164
      $region42: #{preact_unit_forward.5} parent=35 // pred_check_branch
        %240 = sbr.rel (%p238) target = $region44
      $region43: #{preact_unit_forward.5} parent=35 // pred_region
        %p241 = scmp.lt.s32.totalorder %s13, 1
        %s242 = scalar_select %p241, %s13, 1
        %s243 = smul.addr %s242, 8
        %s244 = smul.addr %s243, 8
        %s245 = scalar_lea.vmem %s6, %s244
      $region44: #{preact_unit_forward.5} parent=35 // pred_fallthru
        _
    $region36: #{preact_unit_forward.5} parent=5 // pred_fallthru
      _
    %p246 = scmp.le.s32.totalorder 1, %s13
    %p247 = scmp.lt.s32.totalorder %s13, 3
    %p248 = pnand %p246, %p247
    %p249 = pneg %p248
    // Predicated region
    $region45: #{preact_unit_forward.5} parent=5 // pred_check
      _
    $region46: #{preact_unit_forward.5} parent=5 // pred_check_branch
      %251 = sbr.rel (%p248) target = $region48
    $region47: #{preact_unit_forward.5} parent=5 // pred_region
      %s252 = ssub.s32 %s13, 1
      %p253 = scmp.lt.s32.totalorder %s18, 1
      %s254 = scalar_select %p253, %s18, 1
      %s255 = smul.addr %s254, 20
      %s256 = smul.addr %s255, 8
      %s257 = scalar_lea.vmem %s0, %s256
      %p258 = pneg %p39
      %p259 = pneg %p36
      %p260 = pneg %p60
      %p261 = pneg %p57
      %p262 = pneg %p81
      %p263 = pneg %p78
      %p264 = pneg %p102
      %p265 = pneg %p99
      %p266 = pneg %p123
      %p267 = pneg %p120
      %p268 = pneg %p144
      %p269 = pneg %p141
      %p270 = scmp.lt.s32.totalorder %s18, 1
      %s271 = scalar_select %p270, %s18, 1
      %s272 = smul.addr %s271, 8
      %s273 = smul.addr %s272, 8
      %s274 = scalar_lea.vmem %s6, %s273
      %p275 = pneg %p170
      %p276 = pneg %p167
      %p277 = pneg %p196
      %p278 = pneg %p193
      %p279 = scmp.lt.s32.totalorder %s18, 1
      %s280 = scalar_select %p279, %s18, 1
      %s281 = smul.addr %s280, 8
      %s282 = smul.addr %s281, 8
      %s283 = scalar_lea.vmem %s7, %s282
      %p284 = scmp.lt.s32.totalorder %s18, 1
      %s285 = scalar_select %p284, %s18, 1
      %s286 = smul.addr %s285, 20
      %s287 = smul.addr %s286, 8
      %s288 = scalar_lea.vmem %s0, %s287
      %p289 = scmp.lt.s32.totalorder %s18, 1
      %s290 = scalar_select %p289, %s18, 1
      %s291 = smul.addr %s290, 8
      %s292 = smul.addr %s291, 8
      %s293 = scalar_lea.vmem %s6, %s292
      %p294 = scmp.lt.s32.totalorder %s18, 1
      %s295 = scalar_select %p294, %s18, 1
      %s296 = smul.addr %s295, 8
      %s297 = smul.addr %s296, 8
      %s298 = scalar_lea.vmem %s7, %s297
      %v300 = vld [vmem:[%s288] sm:$0xff]
      %v301 = vld [vmem:[%s288 + $0x8] sm:$0x3]
      %v302 = vld [vmem:[%s288 + $0x10] sm:$0xff]
      %v303 = vld [vmem:[%s288 + $0x18] sm:$0x3]
      %v304 = vld [vmem:[%s288 + $0x20] sm:$0xff]
      %v305 = vld [vmem:[%s288 + $0x28] sm:$0x3]
      %v306 = vld [vmem:[%s288 + $0x30] sm:$0xff]
      %v307 = vld [vmem:[%s288 + $0x38] sm:$0x3]
      %v308 = vld [vmem:[%s288 + $0x40] sm:$0xff]
      %v309 = vld [vmem:[%s288 + $0x48] sm:$0x3]
      %v310 = vld [vmem:[%s288 + $0x50] sm:$0xff]
      %v311 = vld [vmem:[%s288 + $0x58] sm:$0x3]
      %v312 = vld [vmem:[%s288 + $0x60] sm:$0xff]
      %v313 = vld [vmem:[%s288 + $0x68] sm:$0x3]
      %v314 = vld [vmem:[%s288 + $0x70] sm:$0xff]
      %v315 = vld [vmem:[%s288 + $0x78] sm:$0x3]
      %v316 = vld [vmem:[%s288 + $0x80] sm:$0xff]
      %v317 = vld [vmem:[%s288 + $0x88] sm:$0x3]
      %v318 = vld [vmem:[%s288 + $0x90] sm:$0xff]
      %v319 = vld [vmem:[%s288 + $0x98] sm:$0x3]
      %v320 = vld [vmem:[%s1] sm:$0x1]
      %v322 = vlaneseq
      %v323 = vshrl.u32 %v322, 7
      %v324 = vsub.s32 0, %v323
      %v325 = vrot.slane %v320, %v324
      %v327 = vmul.f32 %v300, %v325
      %v328 = vmul.f32 %v301, %v325
      %v329 = vmul.f32 %v302, %v325
      %v330 = vmul.f32 %v303, %v325
      %v331 = vmul.f32 %v304, %v325
      %v332 = vmul.f32 %v305, %v325
      %v333 = vmul.f32 %v306, %v325
      %v334 = vmul.f32 %v307, %v325
      %v335 = vmul.f32 %v308, %v325
      %v336 = vmul.f32 %v309, %v325
      %v337 = vmul.f32 %v310, %v325
      %v338 = vmul.f32 %v311, %v325
      %v339 = vmul.f32 %v312, %v325
      %v340 = vmul.f32 %v313, %v325
      %v341 = vmul.f32 %v314, %v325
      %v342 = vmul.f32 %v315, %v325
      %v343 = vmul.f32 %v316, %v325
      %v344 = vmul.f32 %v317, %v325
      %v345 = vmul.f32 %v318, %v325
      %v346 = vmul.f32 %v319, %v325
      %v347 = vld [vmem:[%s2] sm:$0x1]
      %v349 = vlaneseq
      %v350 = vshrl.u32 %v349, 7
      %v351 = vsub.s32 0, %v350
      %v352 = vrot.slane %v347, %v351
      %v354 = vadd.f32 %v327, %v352
      %v355 = vadd.f32 %v328, %v352
      %v356 = vadd.f32 %v329, %v352
      %v357 = vadd.f32 %v330, %v352
      %v358 = vadd.f32 %v331, %v352
      %v359 = vadd.f32 %v332, %v352
      %v360 = vadd.f32 %v333, %v352
      %v361 = vadd.f32 %v334, %v352
      %v362 = vadd.f32 %v335, %v352
      %v363 = vadd.f32 %v336, %v352
      %v364 = vadd.f32 %v337, %v352
      %v365 = vadd.f32 %v338, %v352
      %v366 = vadd.f32 %v339, %v352
      %v367 = vadd.f32 %v340, %v352
      %v368 = vadd.f32 %v341, %v352
      %v369 = vadd.f32 %v342, %v352
      %v370 = vadd.f32 %v343, %v352
      %v371 = vadd.f32 %v344, %v352
      %v372 = vadd.f32 %v345, %v352
      %v373 = vadd.f32 %v346, %v352
      %v374 = vmax.f32 %v354, 0.0
      %v375 = vmax.f32 %v355, 0.0
      %v376 = vmax.f32 %v356, 0.0
      %v377 = vmax.f32 %v357, 0.0
      %v378 = vmax.f32 %v358, 0.0
      %v379 = vmax.f32 %v359, 0.0
      %v380 = vmax.f32 %v360, 0.0
      %v381 = vmax.f32 %v361, 0.0
      %v382 = vmax.f32 %v362, 0.0
      %v383 = vmax.f32 %v363, 0.0
      %v384 = vmax.f32 %v364, 0.0
      %v385 = vmax.f32 %v365, 0.0
      %v386 = vmax.f32 %v366, 0.0
      %v387 = vmax.f32 %v367, 0.0
      %v388 = vmax.f32 %v368, 0.0
      %v389 = vmax.f32 %v369, 0.0
      %v390 = vmax.f32 %v370, 0.0
      %v391 = vmax.f32 %v371, 0.0
      %v392 = vmax.f32 %v372, 0.0
      %v393 = vmax.f32 %v373, 0.0
      %v394 = vld [vmem:[%s4] sm:$0x1]
      %v395 = vld [vmem:[%s4 + $0x1] sm:$0x1]
      %v396 = vld [vmem:[%s4 + $0x2] sm:$0x1]
      %v397 = vld [vmem:[%s4 + $0x3] sm:$0x1]
      %v398 = vld [vmem:[%s4 + $0x4] sm:$0x1]
      %v399 = vld [vmem:[%s4 + $0x5] sm:$0x1]
      %v400 = vld [vmem:[%s4 + $0x6] sm:$0x1]
      %v401 = vld [vmem:[%s4 + $0x7] sm:$0x1]
      %v402 = vld [vmem:[%s4 + $0x8] sm:$0x1]
      %v403 = vld [vmem:[%s4 + $0x9] sm:$0x1]
      %v414 = vlaneseq
      %v415 = vshrl.u32 %v414, 7
      %v416 = vsub.s32 0, %v415
      %v417 = vrot.slane %v394, %v416
      %v418 = vlaneseq
      %v419 = vshrl.u32 %v418, 7
      %v420 = vsub.s32 0, %v419
      %v421 = vrot.slane %v395, %v420
      %v422 = vlaneseq
      %v423 = vshrl.u32 %v422, 7
      %v424 = vsub.s32 0, %v423
      %v425 = vrot.slane %v396, %v424
      %v426 = vlaneseq
      %v427 = vshrl.u32 %v426, 7
      %v428 = vsub.s32 0, %v427
      %v429 = vrot.slane %v397, %v428
      %v430 = vlaneseq
      %v431 = vshrl.u32 %v430, 7
      %v432 = vsub.s32 0, %v431
      %v433 = vrot.slane %v398, %v432
      %v434 = vlaneseq
      %v435 = vshrl.u32 %v434, 7
      %v436 = vsub.s32 0, %v435
      %v437 = vrot.slane %v399, %v436
      %v438 = vlaneseq
      %v439 = vshrl.u32 %v438, 7
      %v440 = vsub.s32 0, %v439
      %v441 = vrot.slane %v400, %v440
      %v442 = vlaneseq
      %v443 = vshrl.u32 %v442, 7
      %v444 = vsub.s32 0, %v443
      %v445 = vrot.slane %v401, %v444
      %v446 = vlaneseq
      %v447 = vshrl.u32 %v446, 7
      %v448 = vsub.s32 0, %v447
      %v449 = vrot.slane %v402, %v448
      %v450 = vlaneseq
      %v451 = vshrl.u32 %v450, 7
      %v452 = vsub.s32 0, %v451
      %v453 = vrot.slane %v403, %v452
      %v464 = vmul.f32 %v374, %v417
      %v465 = vmul.f32 %v375, %v417
      %v466 = vmul.f32 %v376, %v421
      %v467 = vmul.f32 %v377, %v421
      %v468 = vmul.f32 %v378, %v425
      %v469 = vmul.f32 %v379, %v425
      %v470 = vmul.f32 %v380, %v429
      %v471 = vmul.f32 %v381, %v429
      %v472 = vmul.f32 %v382, %v433
      %v473 = vmul.f32 %v383, %v433
      %v474 = vmul.f32 %v384, %v437
      %v475 = vmul.f32 %v385, %v437
      %v476 = vmul.f32 %v386, %v441
      %v477 = vmul.f32 %v387, %v441
      %v478 = vmul.f32 %v388, %v445
      %v479 = vmul.f32 %v389, %v445
      %v480 = vmul.f32 %v390, %v449
      %v481 = vmul.f32 %v391, %v449
      %v482 = vmul.f32 %v392, %v453
      %v483 = vmul.f32 %v393, %v453
      %v484 = vld [vmem:[%s5] sm:$0xff]
      %v485 = vld [vmem:[%s5 + $0x8] sm:$0x3]
      %v486 = vmul.f32 %v464, %v484
      %v487 = vmul.f32 %v465, %v485
      %v488 = vmul.f32 %v466, %v484
      %v489 = vmul.f32 %v467, %v485
      %v490 = vmul.f32 %v468, %v484
      %v491 = vmul.f32 %v469, %v485
      %v492 = vmul.f32 %v470, %v484
      %v493 = vmul.f32 %v471, %v485
      %v494 = vmul.f32 %v472, %v484
      %v495 = vmul.f32 %v473, %v485
      %v496 = vmul.f32 %v474, %v484
      %v497 = vmul.f32 %v475, %v485
      %v498 = vmul.f32 %v476, %v484
      %v499 = vmul.f32 %v477, %v485
      %v500 = vmul.f32 %v478, %v484
      %v501 = vmul.f32 %v479, %v485
      %v502 = vmul.f32 %v480, %v484
      %v503 = vmul.f32 %v481, %v485
      %v504 = vmul.f32 %v482, %v484
      %v505 = vmul.f32 %v483, %v485
      %v506 = vpack.c.bf16 %v487, %v486
      %v507 = vpack.c.bf16 %v489, %v488
      %v508 = vpack.c.bf16 %v491, %v490
      %v509 = vpack.c.bf16 %v493, %v492
      %v510 = vpack.c.bf16 %v495, %v494
      %v511 = vpack.c.bf16 %v497, %v496
      %v512 = vpack.c.bf16 %v499, %v498
      %v513 = vpack.c.bf16 %v501, %v500
      %v514 = vpack.c.bf16 %v503, %v502
      %v515 = vpack.c.bf16 %v505, %v504
      %v517 = vshrl.u32 %v506, 16
      %v519 = vshll.u32 %v506, 16
      %v521 = vrot.slane %v519, 1
      %v522 = vor.u32 %v517, %v521
      %v524 = vshrl.u32 %v507, 16
      %v526 = vshll.u32 %v507, 16
      %v528 = vrot.slane %v526, 1
      %v529 = vor.u32 %v524, %v528
      %v531 = vshrl.u32 %v508, 16
      %v533 = vshll.u32 %v508, 16
      %v535 = vrot.slane %v533, 1
      %v536 = vor.u32 %v531, %v535
      %v538 = vshrl.u32 %v509, 16
      %v540 = vshll.u32 %v509, 16
      %v542 = vrot.slane %v540, 1
      %v543 = vor.u32 %v538, %v542
      %v545 = vshrl.u32 %v510, 16
      %v547 = vshll.u32 %v510, 16
      %v549 = vrot.slane %v547, 1
      %v550 = vor.u32 %v545, %v549
      %v552 = vshrl.u32 %v511, 16
      %v554 = vshll.u32 %v511, 16
      %v556 = vrot.slane %v554, 1
      %v557 = vor.u32 %v552, %v556
      %v559 = vshrl.u32 %v512, 16
      %v561 = vshll.u32 %v512, 16
      %v563 = vrot.slane %v561, 1
      %v564 = vor.u32 %v559, %v563
      %v566 = vshrl.u32 %v513, 16
      %v568 = vshll.u32 %v513, 16
      %v570 = vrot.slane %v568, 1
      %v571 = vor.u32 %v566, %v570
      %v573 = vshrl.u32 %v514, 16
      %v575 = vshll.u32 %v514, 16
      %v577 = vrot.slane %v575, 1
      %v578 = vor.u32 %v573, %v577
      %v580 = vshrl.u32 %v515, 16
      %v582 = vshll.u32 %v515, 16
      %v584 = vrot.slane %v582, 1
      %v585 = vor.u32 %v580, %v584
      %586 = vrot.lane.b32.xlu0 %v522, 8
      %v587 = vpop.permute.xlu0 %586
      %588 = vrot.lane.b32.xlu0 %v529, 8
      %v589 = vpop.permute.xlu0 %588
      %590 = vrot.lane.b32.xlu0 %v536, 8
      %v591 = vpop.permute.xlu0 %590
      %592 = vrot.lane.b32.xlu0 %v543, 8
      %v593 = vpop.permute.xlu0 %592
      %594 = vrot.lane.b32.xlu0 %v550, 8
      %v595 = vpop.permute.xlu0 %594
      %596 = vrot.lane.b32.xlu0 %v557, 8
      %v597 = vpop.permute.xlu0 %596
      %598 = vrot.lane.b32.xlu0 %v564, 8
      %v599 = vpop.permute.xlu0 %598
      %600 = vrot.lane.b32.xlu0 %v571, 8
      %v601 = vpop.permute.xlu0 %600
      %602 = vrot.lane.b32.xlu0 %v578, 8
      %v603 = vpop.permute.xlu0 %602
      %604 = vrot.lane.b32.xlu0 %v585, 8
      %v605 = vpop.permute.xlu0 %604
      %v616 = vrot.slane %v506, 1
      %v617 = vrot.slane %v507, 1
      %v618 = vrot.slane %v508, 1
      %v619 = vrot.slane %v509, 1
      %v620 = vrot.slane %v510, 1
      %v621 = vrot.slane %v511, 1
      %v622 = vrot.slane %v512, 1
      %v623 = vrot.slane %v513, 1
      %v624 = vrot.slane %v514, 1
      %v625 = vrot.slane %v515, 1
      %626 = vrot.lane.b32.xlu0 %v616, 16
      %v627 = vpop.permute.xlu0 %626
      %628 = vrot.lane.b32.xlu0 %v617, 16
      %v629 = vpop.permute.xlu0 %628
      %630 = vrot.lane.b32.xlu0 %v618, 16
      %v631 = vpop.permute.xlu0 %630
      %632 = vrot.lane.b32.xlu0 %v619, 16
      %v633 = vpop.permute.xlu0 %632
      %634 = vrot.lane.b32.xlu0 %v620, 16
      %v635 = vpop.permute.xlu0 %634
      %636 = vrot.lane.b32.xlu0 %v621, 16
      %v637 = vpop.permute.xlu0 %636
      %638 = vrot.lane.b32.xlu0 %v622, 16
      %v639 = vpop.permute.xlu0 %638
      %640 = vrot.lane.b32.xlu0 %v623, 16
      %v641 = vpop.permute.xlu0 %640
      %642 = vrot.lane.b32.xlu0 %v624, 16
      %v643 = vpop.permute.xlu0 %642
      %644 = vrot.lane.b32.xlu0 %v625, 16
      %v645 = vpop.permute.xlu0 %644
      %vm646 = vcmask 64512
      %v648 = vsel %vm646, %v506, %v587
      %v650 = vsel %vm646, %v507, %v589
      %v652 = vsel %vm646, %v508, %v591
      %v654 = vsel %vm646, %v509, %v593
      %v656 = vsel %vm646, %v510, %v595
      %v658 = vsel %vm646, %v511, %v597
      %v660 = vsel %vm646, %v512, %v599
      %v662 = vsel %vm646, %v513, %v601
      %v664 = vsel %vm646, %v514, %v603
      %v666 = vsel %vm646, %v515, %v605
      %vm667 = vcmask 130048
      %v669 = vsel %vm667, %v648, %v627
      %v671 = vsel %vm667, %v650, %v629
      %v673 = vsel %vm667, %v652, %v631
      %v675 = vsel %vm667, %v654, %v633
      %v677 = vsel %vm667, %v656, %v635
      %v679 = vsel %vm667, %v658, %v637
      %v681 = vsel %vm667, %v660, %v639
      %v683 = vsel %vm667, %v662, %v641
      %v685 = vsel %vm667, %v664, %v643
      %v687 = vsel %vm667, %v666, %v645
      %v688 = vld [vmem:[%s3] sm:$0xf]
      %v689 = vld [vmem:[%s3 + $0x4] sm:$0xf]
      %v690 = vld [vmem:[%s3 + $0x8] sm:$0xf]
      %s691 = scalar_lea.vmem %s3, 12
      %v692 = vld [vmem:[%s691] sm:$0xf]
      %v693 = vld [vmem:[%s691 + $0x4] sm:$0xf]
      %v694 = vld [vmem:[%s691 + $0x8] sm:$0xf]
      %v703 = vunpack.c.l.b16 %v671
      %v704 = vunpack.c.l.b16 %v673
      %v705 = vunpack.c.l.b16 %v675
      %v706 = vunpack.c.l.b16 %v677
      %v707 = vunpack.c.l.b16 %v679
      %v708 = vunpack.c.l.b16 %v681
      %v709 = vunpack.c.l.b16 %v683
      %v710 = vunpack.c.l.b16 %v685
      %v711 = vpack.c.b16 %v704, %v703
      %v712 = vpack.c.b16 %v706, %v705
      %v713 = vpack.c.b16 %v708, %v707
      %v714 = vpack.c.b16 %v710, %v709
      %v718 = vunpack.c.l.b16 %v692
      %v719 = vunpack.c.l.b16 %v693
      %v720 = vunpack.c.l.b16 %v694
      %v721 = vpack.c.b16 %v719, %v718
      %v722 = vpack.c.b16 %v720, %v720
      %vm724 = vcmask 195584
      %v726 = vsel %vm724, %v711, 0
      %v729 = vsel %vm724, %v712, 0
      %v732 = vsel %vm724, %v713, 0
      %v735 = vsel %vm724, %v714, 0
      %vm737 = vcmask 1043456
      %v739 = vsel %vm737, %v722, 0
      %741 = vmatprep.subr.bf16.mxu0 0
      %742 = vmatpush1.bf16.msra.mxu0 %v721
      %743 = vmatprep.subr.bf16.mxu0 0
      %744 = vmatpush1.bf16.msra.mxu0 %v739
      %745 = vmatprep.subr.bf16.mxu0 0
      %746 = vmatpush1.bf16.msra.mxu0 0
      %747 = vmatprep.subr.bf16.mxu0 0
      %748 = vmatpush1.bf16.msra.mxu0 0
      %749 = vmatprep.subr.bf16.mxu0 0
      %750 = vmatpush1.bf16.msra.mxu0 0
      %751 = vmatprep.subr.bf16.mxu0 0
      %752 = vmatpush1.bf16.msra.mxu0 0
      %753 = vmatprep.subr.bf16.mxu0 0
      %754 = vmatpush1.bf16.msra.mxu0 0
      %755 = vmatprep.subr.bf16.mxu0 0
      %756 = vmatpush1.bf16.msra.mxu0 0
      %757 = vmatprep.subr.bf16.mxu0 0
      %758 = vmatpush1.bf16.msra.mxu0 0
      %759 = vmatprep.subr.bf16.mxu0 0
      %760 = vmatpush1.bf16.msra.mxu0 0
      %761 = vmatprep.subr.bf16.mxu0 0
      %762 = vmatpush1.bf16.msra.mxu0 0
      %763 = vmatprep.subr.bf16.mxu0 0
      %764 = vmatpush1.bf16.msra.mxu0 0
      %765 = vmatprep.subr.bf16.mxu0 0
      %766 = vmatpush1.bf16.msra.mxu0 0
      %767 = vmatprep.subr.bf16.mxu0 0
      %768 = vmatpush1.bf16.msra.mxu0 0
      %769 = vmatprep.subr.bf16.mxu0 0
      %770 = vmatpush1.bf16.msra.mxu0 0
      %771 = vmatprep.subr.bf16.mxu0 0
      %772 = vmatpush1.bf16.msra.mxu0 0
      %773 = vmatprep.mubr.bf16.mxu0 0
      %774 = vmatmul.mubr.bf16.gmra.mrb[0].mxu0 %v726
      %v775 = vpop.f32.mrb[0].mxu0
      %v776 = vadd.f32 0.0, %v775
      %v777 = vpop.f32.mrb[0].mxu0
      %v778 = vpop.f32.mrb[0].mxu0
      %v779 = vadd.f32 0.0, %v778
      %v780 = vpop.f32.mrb[0].mxu0
      %781 = vmatprep.mubr.bf16.mxu0 0
      %782 = vmatmul.mubr.bf16.gmra.mrb[0].mxu0 %v729
      %v783 = vpop.f32.mrb[0].mxu0
      %v784 = vadd.f32 0.0, %v783
      %v785 = vpop.f32.mrb[0].mxu0
      %v786 = vpop.f32.mrb[0].mxu0
      %v787 = vadd.f32 0.0, %v786
      %v788 = vpop.f32.mrb[0].mxu0
      %789 = vmatprep.mubr.bf16.mxu0 0
      %790 = vmatmul.mubr.bf16.gmra.mrb[0].mxu0 %v732
      %v791 = vpop.f32.mrb[0].mxu0
      %v792 = vadd.f32 0.0, %v791
      %v793 = vpop.f32.mrb[0].mxu0
      %v794 = vpop.f32.mrb[0].mxu0
      %v795 = vadd.f32 0.0, %v794
      %v796 = vpop.f32.mrb[0].mxu0
      %797 = vmatprep.mubr.bf16.mxu0 0
      %798 = vmatmul.mubr.bf16.gmra.mrb[0].mxu0 %v735
      %v799 = vpop.f32.mrb[0].mxu0
      %v800 = vadd.f32 0.0, %v799
      %v801 = vpop.f32.mrb[0].mxu0
      %v802 = vpop.f32.mrb[0].mxu0
      %v803 = vadd.f32 0.0, %v802
      %v804 = vpop.f32.mrb[0].mxu0
      %805 = vdwg.mxu0
      %v807 = vunpack.c.l.b16 %v669
      %v808 = vpack.c.b16 %v703, %v807
      %v809 = vpack.c.b16 %v705, %v704
      %v810 = vpack.c.b16 %v707, %v706
      %v811 = vpack.c.b16 %v709, %v708
      %v815 = vunpack.c.l.b16 %v688
      %v816 = vunpack.c.l.b16 %v689
      %v817 = vunpack.c.l.b16 %v690
      %v818 = vpack.c.b16 %v816, %v815
      %v819 = vpack.c.b16 %v817, %v817
      %v822 = vsel %vm724, %v808, 0
      %v825 = vsel %vm724, %v809, 0
      %v828 = vsel %vm724, %v810, 0
      %v831 = vsel %vm724, %v811, 0
      %v834 = vsel %vm737, %v819, 0
      %836 = vmatprep.subr.bf16.mxu0 0
      %837 = vmatpush1.bf16.msra.mxu0 %v818
      %838 = vmatprep.subr.bf16.mxu0 0
      %839 = vmatpush1.bf16.msra.mxu0 %v834
      %840 = vmatprep.subr.bf16.mxu0 0
      %841 = vmatpush1.bf16.msra.mxu0 0
      %842 = vmatprep.subr.bf16.mxu0 0
      %843 = vmatpush1.bf16.msra.mxu0 0
      %844 = vmatprep.subr.bf16.mxu0 0
      %845 = vmatpush1.bf16.msra.mxu0 0
      %846 = vmatprep.subr.bf16.mxu0 0
      %847 = vmatpush1.bf16.msra.mxu0 0
      %848 = vmatprep.subr.bf16.mxu0 0
      %849 = vmatpush1.bf16.msra.mxu0 0
      %850 = vmatprep.subr.bf16.mxu0 0
      %851 = vmatpush1.bf16.msra.mxu0 0
      %852 = vmatprep.subr.bf16.mxu0 0
      %853 = vmatpush1.bf16.msra.mxu0 0
      %854 = vmatprep.subr.bf16.mxu0 0
      %855 = vmatpush1.bf16.msra.mxu0 0
      %856 = vmatprep.subr.bf16.mxu0 0
      %857 = vmatpush1.bf16.msra.mxu0 0
      %858 = vmatprep.subr.bf16.mxu0 0
      %859 = vmatpush1.bf16.msra.mxu0 0
      %860 = vmatprep.subr.bf16.mxu0 0
      %861 = vmatpush1.bf16.msra.mxu0 0
      %862 = vmatprep.subr.bf16.mxu0 0
      %863 = vmatpush1.bf16.msra.mxu0 0
      %864 = vmatprep.subr.bf16.mxu0 0
      %865 = vmatpush1.bf16.msra.mxu0 0
      %866 = vmatprep.subr.bf16.mxu0 0
      %867 = vmatpush1.bf16.msra.mxu0 0
      %868 = vmatprep.mubr.bf16.mxu0 0
      %869 = vmatmul.mubr.bf16.gmra.mrb[0].mxu0 %v822
      %v870 = vpop.f32.mrb[0].mxu0
      %v871 = vadd.f32 %v776, %v870
      %v872 = vpop.f32.mrb[0].mxu0
      %v873 = vpop.f32.mrb[0].mxu0
      %v874 = vadd.f32 %v779, %v873
      %v875 = vpop.f32.mrb[0].mxu0
      %876 = vmatprep.mubr.bf16.mxu0 0
      %877 = vmatmul.mubr.bf16.gmra.mrb[0].mxu0 %v825
      %v878 = vpop.f32.mrb[0].mxu0
      %v879 = vadd.f32 %v784, %v878
      %v880 = vpop.f32.mrb[0].mxu0
      %v881 = vpop.f32.mrb[0].mxu0
      %v882 = vadd.f32 %v787, %v881
      %v883 = vpop.f32.mrb[0].mxu0
      %884 = vmatprep.mubr.bf16.mxu0 0
      %885 = vmatmul.mubr.bf16.gmra.mrb[0].mxu0 %v828
      %v886 = vpop.f32.mrb[0].mxu0
      %v887 = vadd.f32 %v792, %v886
      %v888 = vpop.f32.mrb[0].mxu0
      %v889 = vpop.f32.mrb[0].mxu0
      %v890 = vadd.f32 %v795, %v889
      %v891 = vpop.f32.mrb[0].mxu0
      %892 = vmatprep.mubr.bf16.mxu0 0
      %893 = vmatmul.mubr.bf16.gmra.mrb[0].mxu0 %v831
      %v894 = vpop.f32.mrb[0].mxu0
      %v895 = vadd.f32 %v800, %v894
      %v896 = vpop.f32.mrb[0].mxu0
      %v897 = vpop.f32.mrb[0].mxu0
      %v898 = vadd.f32 %v803, %v897
      %v899 = vpop.f32.mrb[0].mxu0
      %900 = vdwg.mxu0
      %s901 = scalar_lea.vmem %s3, 24
      %v902 = vld [vmem:[%s901] sm:$0xf]
      %v903 = vld [vmem:[%s901 + $0x4] sm:$0xf]
      %v904 = vld [vmem:[%s901 + $0x8] sm:$0xf]
      %v906 = vunpack.c.l.b16 %v687
      %v907 = vpack.c.b16 %v906, %v710
      %v911 = vunpack.c.l.b16 %v902
      %v912 = vunpack.c.l.b16 %v903
      %v913 = vunpack.c.l.b16 %v904
      %v914 = vpack.c.b16 %v912, %v911
      %v915 = vpack.c.b16 %v913, %v913
      %v918 = vsel %vm724, %v907, 0
      %v921 = vsel %vm737, %v915, 0
      %923 = vmatprep.subr.bf16.mxu0 0
      %924 = vmatpush1.bf16.msra.mxu0 %v914
      %925 = vmatprep.subr.bf16.mxu0 0
      %926 = vmatpush1.bf16.msra.mxu0 %v921
      %927 = vmatprep.subr.bf16.mxu0 0
      %928 = vmatpush1.bf16.msra.mxu0 0
      %929 = vmatprep.subr.bf16.mxu0 0
      %930 = vmatpush1.bf16.msra.mxu0 0
      %931 = vmatprep.subr.bf16.mxu0 0
      %932 = vmatpush1.bf16.msra.mxu0 0
      %933 = vmatprep.subr.bf16.mxu0 0
      %934 = vmatpush1.bf16.msra.mxu0 0
      %935 = vmatprep.subr.bf16.mxu0 0
      %936 = vmatpush1.bf16.msra.mxu0 0
      %937 = vmatprep.subr.bf16.mxu0 0
      %938 = vmatpush1.bf16.msra.mxu0 0
      %939 = vmatprep.subr.bf16.mxu0 0
      %940 = vmatpush1.bf16.msra.mxu0 0
      %941 = vmatprep.subr.bf16.mxu0 0
      %942 = vmatpush1.bf16.msra.mxu0 0
      %943 = vmatprep.subr.bf16.mxu0 0
      %944 = vmatpush1.bf16.msra.mxu0 0
      %945 = vmatprep.subr.bf16.mxu0 0
      %946 = vmatpush1.bf16.msra.mxu0 0
      %947 = vmatprep.subr.bf16.mxu0 0
      %948 = vmatpush1.bf16.msra.mxu0 0
      %949 = vmatprep.subr.bf16.mxu0 0
      %950 = vmatpush1.bf16.msra.mxu0 0
      %951 = vmatprep.subr.bf16.mxu0 0
      %952 = vmatpush1.bf16.msra.mxu0 0
      %953 = vmatprep.subr.bf16.mxu0 0
      %954 = vmatpush1.bf16.msra.mxu0 0
      %955 = vmatprep.mubr.bf16.mxu0 0
      %956 = vmatmul.mubr.bf16.gmra.mrb[0].mxu0 %v825
      %v957 = vpop.f32.mrb[0].mxu0
      %v958 = vadd.f32 0.0, %v957
      %v959 = vpop.f32.mrb[0].mxu0
      %v960 = vpop.f32.mrb[0].mxu0
      %v961 = vadd.f32 0.0, %v960
      %v962 = vpop.f32.mrb[0].mxu0
      %963 = vmatprep.mubr.bf16.mxu0 0
      %964 = vmatmul.mubr.bf16.gmra.mrb[0].mxu0 %v828
      %v965 = vpop.f32.mrb[0].mxu0
      %v966 = vadd.f32 0.0, %v965
      %v967 = vpop.f32.mrb[0].mxu0
      %v968 = vpop.f32.mrb[0].mxu0
      %v969 = vadd.f32 0.0, %v968
      %v970 = vpop.f32.mrb[0].mxu0
      %971 = vmatprep.mubr.bf16.mxu0 0
      %972 = vmatmul.mubr.bf16.gmra.mrb[0].mxu0 %v831
      %v973 = vpop.f32.mrb[0].mxu0
      %v974 = vadd.f32 0.0, %v973
      %v975 = vpop.f32.mrb[0].mxu0
      %v976 = vpop.f32.mrb[0].mxu0
      %v977 = vadd.f32 0.0, %v976
      %v978 = vpop.f32.mrb[0].mxu0
      %979 = vmatprep.mubr.bf16.mxu0 0
      %980 = vmatmul.mubr.bf16.gmra.mrb[0].mxu0 %v918
      %v981 = vpop.f32.mrb[0].mxu0
      %v982 = vadd.f32 0.0, %v981
      %v983 = vpop.f32.mrb[0].mxu0
      %v984 = vpop.f32.mrb[0].mxu0
      %v985 = vadd.f32 0.0, %v984
      %v986 = vpop.f32.mrb[0].mxu0
      %987 = vdwg.mxu0
      %v988 = vadd.f32 %v871, %v958
      %v989 = vadd.f32 %v874, %v961
      %v990 = vadd.f32 %v879, %v966
      %v991 = vadd.f32 %v882, %v969
      %v992 = vadd.f32 %v887, %v974
      %v993 = vadd.f32 %v890, %v977
      %v994 = vadd.f32 %v895, %v982
      %v995 = vadd.f32 %v898, %v985
      %v996 = vld [vmem:[%s293] sm:$0xff]
      %v997 = vld [vmem:[%s293 + $0x8] sm:$0xff]
      %v998 = vld [vmem:[%s293 + $0x10] sm:$0xff]
      %v999 = vld [vmem:[%s293 + $0x18] sm:$0xff]
      %v1000 = vld [vmem:[%s293 + $0x20] sm:$0xff]
      %v1001 = vld [vmem:[%s293 + $0x28] sm:$0xff]
      %v1002 = vld [vmem:[%s293 + $0x30] sm:$0xff]
      %v1003 = vld [vmem:[%s293 + $0x38] sm:$0xff]
      %v1004 = vadd.f32 %v988, %v996
      %v1005 = vadd.f32 %v989, %v997
      %v1006 = vadd.f32 %v990, %v998
      %v1007 = vadd.f32 %v991, %v999
      %v1008 = vadd.f32 %v992, %v1000
      %v1009 = vadd.f32 %v993, %v1001
      %v1010 = vadd.f32 %v994, %v1002
      %v1011 = vadd.f32 %v995, %v1003
      %1012 = vst.msk [vmem:[%s298] sm:$0xff] %vm646, %v1004
      %1013 = vst.msk [vmem:[%s298 + $0x8] sm:$0xff] %vm646, %v1005
      %1014 = vst.msk [vmem:[%s298 + $0x10] sm:$0xff] %vm646, %v1006
      %1015 = vst.msk [vmem:[%s298 + $0x18] sm:$0xff] %vm646, %v1007
      %1016 = vst.msk [vmem:[%s298 + $0x20] sm:$0xff] %vm646, %v1008
      %1017 = vst.msk [vmem:[%s298 + $0x28] sm:$0xff] %vm646, %v1009
      %1018 = vst.msk [vmem:[%s298 + $0x30] sm:$0xff] %vm646, %v1010
      %1019 = vst.msk [vmem:[%s298 + $0x38] sm:$0xff] %vm646, %v1011
      %p1020 = scmp.lt.s32.totalorder %s18, 1
      %s1021 = scalar_select %p1020, %s18, 1
      %s1022 = smul.addr %s1021, 8
      %s1023 = smul.addr %s1022, 8
      %s1024 = scalar_lea.vmem %s7, %s1023
      // Predicated region
      $region49: #{preact_unit_forward.5} parent=47 // pred_check
        %p1025 = pneg %p193
      $region50: #{preact_unit_forward.5} parent=47 // pred_check_branch
        %1027 = sbr.rel (%p1025) target = $region52
      $region51: #{preact_unit_forward.5} parent=47 // pred_region
        _
      $region52: #{preact_unit_forward.5} parent=47 // pred_fallthru
        _
    $region48: #{preact_unit_forward.5} parent=5 // pred_fallthru
      _
    %p1028 = scmp.le.s32.totalorder 2, %s13
    // Predicated region
    $region53: #{preact_unit_forward.5} parent=5 // pred_check
      %p1029 = pneg %p1028
    $region54: #{preact_unit_forward.5} parent=5 // pred_check_branch
      %1031 = sbr.rel (%p1029) target = $region56
    $region55: #{preact_unit_forward.5} parent=5 // pred_region
      %s1032 = ssub.s32 %s13, 2
      // Predicated region
      $region57: #{preact_unit_forward.5} parent=55 // pred_check
        %p1033 = pneg %p199
      $region58: #{preact_unit_forward.5} parent=55 // pred_check_branch
        %1035 = sbr.rel (%p1033) target = $region60
      $region59: #{preact_unit_forward.5} parent=55 // pred_region
        %p1036 = scmp.lt.s32.totalorder %s19, 1
        %s1037 = scalar_select %p1036, %s19, 1
        %s1038 = smul.addr %s1037, 8
        %s1039 = smul.addr %s1038, 8
        %s1040 = scalar_lea.vmem %s7, %s1039
      $region60: #{preact_unit_forward.5} parent=55 // pred_fallthru
        _
    $region56: #{preact_unit_forward.5} parent=5 // pred_fallthru
      _
  $region6: #{preact_unit_forward.5} parent=0 // loop_footer
    %s17 = sadd.s32 1, %s13
  $region7: #{preact_unit_forward.5} parent=0 // loop_footer_branch
    %12 = sbr.rel target = $region3
  $region8: #{preact_unit_forward.5} parent=0 // loop_exit
    _

</llo_original>
